<compile_context>
chip_gen: v7x
topology: tpu7x:2x2x1
jax: 0.10.0
libtpu: 0.0.40
codegen_flags: <defaults>
</compile_context>

<pallas_src>
import jax
import jax.numpy as jnp
from jax.experimental import pallas as pl
from jax.experimental.pallas import tpu as pltpu


# ----------------------------------------------------------------------------
# Pallas kernel: one program per batch element.  All coils handled by folding
# them into the lane (N / M) dimension of the DFT matmuls.
# ----------------------------------------------------------------------------
def _dc_kernel(pred_ref,      # VMEM (1, 2, H, W)        prediction (real/imag planes)
               prev_ref,      # VMEM (1, 2, H, C*W)      prev_prediction k-space
               ref_ref,       # VMEM (1, 2, H, C*W)      reference k-space
               mw_ref,        # VMEM (H, C*W)            mask * dc_weight (coil-tiled)
               fr_ref,        # VMEM (3, H, H)           fwd row DFT  [Re, Im, Re+Im]
               fct_ref,       # VMEM (3, W, C*W)         fwd col DFT^T, coil-tiled
               ir_ref,        # VMEM (3, H, H)           inv row DFT  [Re, Im, Re+Im]
               ic_ref,        # VMEM (2, C*W, 2*C*W)     inv col DFT^T, block-diag + r/i split
               out_ref):      # VMEM (1, H, 2*C*W)
    def dot(a, b):
        return jnp.dot(a, b, preferred_element_type=jnp.float32)

    # ---- forward centered FFT2 of the (coil-invariant) prediction ----------
    xr = pred_ref[0, 0]                        # (H, W)
    xi = pred_ref[0, 1]
    # rows: T = Fh @ X   (Karatsuba: 3 matmuls)
    a1 = dot(fr_ref[0], xr)
    a2 = dot(fr_ref[1], xi)
    a3 = dot(fr_ref[2], xr + xi)
    tr = a1 - a2
    ti = a3 - a1 - a2
    # cols: Y = T @ Fw^T, Fw^T pre-tiled over coils -> Y arrives as (H, C*W)
    b1 = dot(tr, fct_ref[0])
    b2 = dot(ti, fct_ref[1])
    b3 = dot(tr + ti, fct_ref[2])
    yr = b1 - b2                               # (H, C*W)
    yi = b3 - b1 - b2

    # ---- soft data consistency (mask * dc_weight folded in the wrapper) ----
    mw = mw_ref[...]
    kr = prev_ref[0, 0] - mw * (yr - ref_ref[0, 0]) - yr
    ki = prev_ref[0, 1] - mw * (yi - ref_ref[0, 1]) - yi

    # ---- inverse centered FFT2, coils folded into the matmul ---------------
    # rows: U = Fih @ K   (H,H)@(H,C*W)
    c1 = dot(ir_ref[0], kr)
    c2 = dot(ir_ref[1], ki)
    c3 = dot(ir_ref[2], kr + ki)
    ur = c1 - c2
    ui = c3 - c1 - c2
    # cols: O = U @ blockdiag(Fiw^T); real/imag split folded into the matrix so
    # the result lands directly as one lane-dense (H, 2*C*W) slab.
    out_ref[0] = dot(ur, ic_ref[0]) + dot(ui, ic_ref[1])


# ----------------------------------------------------------------------------
# Glue: centered/normalized DFT matrices + layout plumbing + pallas_call.
# ----------------------------------------------------------------------------
def _centered_dft_matrix(n, norm, centered, inverse):
    """Matrix M such that M @ x == (fftshift o (i)fft o ifftshift)(x)."""
    eye = jnp.eye(n, dtype=jnp.complex64)
    x = jnp.fft.ifftshift(eye, axes=0) if centered else eye
    x = (jnp.fft.ifft if inverse else jnp.fft.fft)(x, axis=0, norm=norm)
    x = jnp.fft.fftshift(x, axes=0) if centered else x
    return x


def seranet_dc(prediction, prev_prediction, reference_kspace, mask, dc_weight,
               fft_centered=True, fft_normalization="ortho"):
    """prediction: (B,H,W,2); prev/ref: (B,C,H,W,2); mask: (1,1,H,W,1); dc_weight: (1,)."""
    prediction = prediction.astype(jnp.float32)
    prev_prediction = prev_prediction.astype(jnp.float32)
    reference_kspace = reference_kspace.astype(jnp.float32)

    B, H, W, _ = prediction.shape
    _, C, _, _, _ = reference_kspace.shape
    CW = C * W

    # ---- DFT matrices (f32 split-complex, Karatsuba sums precomputed) ------
    fh = _centered_dft_matrix(H, fft_normalization, fft_centered, inverse=False)
    fw = _centered_dft_matrix(W, fft_normalization, fft_centered, inverse=False)
    fih = _centered_dft_matrix(H, fft_normalization, fft_centered, inverse=True)
    fiw = _centered_dft_matrix(W, fft_normalization, fft_centered, inverse=True)

    fhr, fhi = jnp.real(fh), jnp.imag(fh)
    fwtr, fwti = jnp.real(fw).T, jnp.imag(fw).T          # Fw^T
    fihr, fihi = jnp.real(fih), jnp.imag(fih)
    fiwtr, fiwti = jnp.real(fiw).T, jnp.imag(fiw).T      # Fiw^T

    # forward row transform: [Re, Im, Re+Im]
    fr = jnp.stack([fhr, fhi, fhr + fhi]).astype(jnp.float32)              # (3,H,H)
    # forward col transform, pre-tiled across coils: (3, W, C*W)
    ones_c = jnp.ones((1, C), jnp.float32)
    fct = jnp.stack([jnp.kron(ones_c, fwtr),
                     jnp.kron(ones_c, fwti),
                     jnp.kron(ones_c, fwtr + fwti)]).astype(jnp.float32)
    # inverse row transform: [Re, Im, Re+Im]
    ir = jnp.stack([fihr, fihi, fihr + fihi]).astype(jnp.float32)          # (3,H,H)
    # inverse col transform: block-diagonal over coils, real/imag split folded
    # into the matrix so  [Or | Oi] = Ur @ Er + Ui @ Ei.
    eye_c = jnp.eye(C, dtype=jnp.float32)
    dr = jnp.kron(eye_c, fiwtr)                                            # (CW,CW)
    di = jnp.kron(eye_c, fiwti)
    ic = jnp.stack([jnp.concatenate([dr, di], axis=1),
                    jnp.concatenate([-di, dr], axis=1)]).astype(jnp.float32)  # (2,CW,2CW)

    # ---- layout plumbing (all in the XLA wrapper, not the kernel) ----------
    pred_ri = jnp.moveaxis(prediction, -1, 1)                              # (B,2,H,W)
    prev_k = jnp.transpose(prev_prediction, (0, 4, 2, 1, 3)).reshape(B, 2, H, CW)
    ref_k = jnp.transpose(reference_kspace, (0, 4, 2, 1, 3)).reshape(B, 2, H, CW)
    mask2d = jnp.reshape(mask, (H, W))
    mw2d = jnp.where(mask2d != 0, dc_weight.astype(jnp.float32)[0], 0.0)
    mw = jnp.tile(mw2d, (1, C)).astype(jnp.float32)                        # (H, C*W)

    const3 = lambda b: (0, 0, 0)

    out_flat = pl.pallas_call(
        _dc_kernel,
        out_shape=jax.ShapeDtypeStruct((B, H, 2 * CW), jnp.float32),
        grid=(B,),
        in_specs=[
            pl.BlockSpec((1, 2, H, W), lambda b: (b, 0, 0, 0)),            # prediction
            pl.BlockSpec((1, 2, H, CW), lambda b: (b, 0, 0, 0)),           # prev k-space
            pl.BlockSpec((1, 2, H, CW), lambda b: (b, 0, 0, 0)),           # reference k-space
            pl.BlockSpec((H, CW), lambda b: (0, 0)),                       # mask * dc_weight
            pl.BlockSpec((3, H, H), const3),                               # fwd row DFT
            pl.BlockSpec((3, W, CW), const3),                              # fwd col DFT^T (tiled)
            pl.BlockSpec((3, H, H), const3),                               # inv row DFT
            pl.BlockSpec((2, CW, 2 * CW), const3),                         # inv col DFT^T (fused)
        ],
        out_specs=pl.BlockSpec((1, H, 2 * CW), lambda b: (b, 0, 0)),
        compiler_params=pltpu.CompilerParams(
            dimension_semantics=("parallel",),
            vmem_limit_bytes=32 * 1024 * 1024,
        ),
    )(pred_ri, prev_k, ref_k, mw, fr, fct, ir, ic)

    # (B, H, 2*C*W) -> (B, H, 2, C, W) -> (B, C, H, W, 2)
    out5 = out_flat.reshape(B, H, 2, C, W)
    return jnp.transpose(out5, (0, 3, 1, 4, 2))


# ----------------------------------------------------------------------------
# Pure-JAX reference (mirrors the PyTorch module) for a correctness check.
# ----------------------------------------------------------------------------
def _ref_forward(prediction, prev_prediction, reference_kspace, mask, dc_weight,
                 fft_centered=True, fft_normalization="ortho"):
    def fft2c(x, inverse=False):
        if fft_centered:
            x = jnp.fft.ifftshift(x, axes=(-2, -1))
        fn = jnp.fft.ifftn if inverse else jnp.fft.fftn
        x = fn(x, axes=(-2, -1), norm=fft_normalization)
        if fft_centered:
            x = jnp.fft.fftshift(x, axes=(-2, -1))
        return x

    to_c = lambda a: a[..., 0] + 1j * a[..., 1]
    kp = fft2c(to_c(prediction.astype(jnp.float32)))[:, None]       # (B,1,H,W)
    refc = to_c(reference_kspace.astype(jnp.float32))
    prevc = to_c(prev_prediction.astype(jnp.float32))
    mb = mask[..., 0] != 0                                           # (1,1,H,W)
    soft = jnp.where(mb, kp - refc, 0.0) * dc_weight[0]
    out = fft2c(prevc - soft - kp, inverse=True)
    return jnp.stack([jnp.real(out), jnp.imag(out)], axis=-1)


if __name__ == "__main__":
    key = jax.random.PRNGKey(0)
    B, C, H, W = 2, 4, 16, 16
    k1, k2, k3, k4 = jax.random.split(key, 4)

    prediction = jax.random.normal(k1, (B, H, W, 2), dtype=jnp.float32)
    prev_prediction = jax.random.normal(k2, (B, C, H, W, 2), dtype=jnp.float32)
    reference_kspace = jax.random.normal(k3, (B, C, H, W, 2), dtype=jnp.float32)
    mask = (jax.random.uniform(k4, (1, 1, H, W, 1)) > 0.5).astype(jnp.float32)
    dc_weight = jnp.ones((1,), dtype=jnp.float32)        # nn.Parameter(torch.ones(1))

    out = seranet_dc(prediction, prev_prediction, reference_kspace, mask, dc_weight)
    out = jax.block_until_ready(out)

    ref = _ref_forward(prediction, prev_prediction, reference_kspace, mask, dc_weight)
    assert out.shape == (B, C, H, W, 2)
    assert jnp.allclose(out, ref, atol=1e-3, rtol=1e-3), float(jnp.max(jnp.abs(out - ref)))
    print("KERNEL_OK")
</pallas_src>

<mosaic_0001>
module attributes {stable_mosaic.version = 11 : i64} {
  func.func @_dc_kernel(%arg0: i32, %arg1: memref<1x2x16x16xf32, #tpu.memory_space<vmem>>, %arg2: memref<1x2x16x64xf32, #tpu.memory_space<vmem>>, %arg3: memref<1x2x16x64xf32, #tpu.memory_space<vmem>>, %arg4: memref<16x64xf32, #tpu.memory_space<vmem>>, %arg5: memref<3x16x16xf32, #tpu.memory_space<vmem>>, %arg6: memref<3x16x64xf32, #tpu.memory_space<vmem>>, %arg7: memref<3x16x16xf32, #tpu.memory_space<vmem>>, %arg8: memref<2x64x128xf32, #tpu.memory_space<vmem>>, %arg9: memref<1x16x128xf32, #tpu.memory_space<vmem>>) attributes {dimension_semantics = [#tpu.dimension_semantics<parallel>], iteration_bounds = array<i64: 2>, scalar_prefetch = 0 : i64, scratch_operands = 0 : i64, tpu.core_type = #tpu.core_type<tc>, window_params = [{transform_indices = @transform_0, window_bounds = array<i64: 1, 2, 16, 16>}, {transform_indices = @transform_1, window_bounds = array<i64: 1, 2, 16, 64>}, {transform_indices = @transform_2, window_bounds = array<i64: 1, 2, 16, 64>}, {pipeline_mode = #tpu.pipeline_mode<synchronous>, transform_indices = @transform_3, window_bounds = array<i64: 16, 64>}, {pipeline_mode = #tpu.pipeline_mode<synchronous>, transform_indices = @transform_4, window_bounds = array<i64: 3, 16, 16>}, {pipeline_mode = #tpu.pipeline_mode<synchronous>, transform_indices = @transform_5, window_bounds = array<i64: 3, 16, 64>}, {pipeline_mode = #tpu.pipeline_mode<synchronous>, transform_indices = @transform_6, window_bounds = array<i64: 3, 16, 16>}, {pipeline_mode = #tpu.pipeline_mode<synchronous>, transform_indices = @transform_7, window_bounds = array<i64: 2, 64, 128>}, {transform_indices = @transform_8, window_bounds = array<i64: 1, 16, 128>}]} {
    %c0 = arith.constant 0 : index
    %c0_0 = arith.constant 0 : index
    %c0_1 = arith.constant 0 : index
    %c0_2 = arith.constant 0 : index
    %0 = vector.load %arg1[%c0, %c0_0, %c0_1, %c0_2] : memref<1x2x16x16xf32, #tpu.memory_space<vmem>>, vector<1x1x16x16xf32>
    %1 = vector.shape_cast %0 : vector<1x1x16x16xf32> to vector<16x16xf32>
    %c0_3 = arith.constant 0 : index
    %c1 = arith.constant 1 : index
    %c0_4 = arith.constant 0 : index
    %c0_5 = arith.constant 0 : index
    %2 = vector.load %arg1[%c0_3, %c1, %c0_4, %c0_5] : memref<1x2x16x16xf32, #tpu.memory_space<vmem>>, vector<1x1x16x16xf32>
    %3 = vector.shape_cast %2 : vector<1x1x16x16xf32> to vector<16x16xf32>
    %c0_6 = arith.constant 0 : index
    %c0_7 = arith.constant 0 : index
    %c0_8 = arith.constant 0 : index
    %4 = vector.load %arg5[%c0_6, %c0_7, %c0_8] : memref<3x16x16xf32, #tpu.memory_space<vmem>>, vector<1x16x16xf32>
    %5 = vector.shape_cast %4 : vector<1x16x16xf32> to vector<16x16xf32>
    %cst = arith.constant dense<0.000000e+00> : vector<16x16xf32>
    %6 = tpu.matmul %5, %1, %cst {dimension_numbers = #tpu.dot_dimension_numbers<[1], [0], [0], [1], [0, 0, 1, 1], [], []>} : vector<16x16xf32>, vector<16x16xf32>, vector<16x16xf32> -> vector<16x16xf32>
    %c1_9 = arith.constant 1 : index
    %c0_10 = arith.constant 0 : index
    %c0_11 = arith.constant 0 : index
    %7 = vector.load %arg5[%c1_9, %c0_10, %c0_11] : memref<3x16x16xf32, #tpu.memory_space<vmem>>, vector<1x16x16xf32>
    %8 = vector.shape_cast %7 : vector<1x16x16xf32> to vector<16x16xf32>
    %cst_12 = arith.constant dense<0.000000e+00> : vector<16x16xf32>
    %9 = tpu.matmul %8, %3, %cst_12 {dimension_numbers = #tpu.dot_dimension_numbers<[1], [0], [0], [1], [0, 0, 1, 1], [], []>} : vector<16x16xf32>, vector<16x16xf32>, vector<16x16xf32> -> vector<16x16xf32>
    %c2 = arith.constant 2 : index
    %c0_13 = arith.constant 0 : index
    %c0_14 = arith.constant 0 : index
    %10 = vector.load %arg5[%c2, %c0_13, %c0_14] : memref<3x16x16xf32, #tpu.memory_space<vmem>>, vector<1x16x16xf32>
    %11 = vector.shape_cast %10 : vector<1x16x16xf32> to vector<16x16xf32>
    %12 = arith.addf %1, %3 : vector<16x16xf32>
    %cst_15 = arith.constant dense<0.000000e+00> : vector<16x16xf32>
    %13 = tpu.matmul %11, %12, %cst_15 {dimension_numbers = #tpu.dot_dimension_numbers<[1], [0], [0], [1], [0, 0, 1, 1], [], []>} : vector<16x16xf32>, vector<16x16xf32>, vector<16x16xf32> -> vector<16x16xf32>
    %14 = arith.subf %6, %9 : vector<16x16xf32>
    %15 = arith.subf %13, %6 : vector<16x16xf32>
    %16 = arith.subf %15, %9 : vector<16x16xf32>
    %c0_16 = arith.constant 0 : index
    %c0_17 = arith.constant 0 : index
    %c0_18 = arith.constant 0 : index
    %17 = vector.load %arg6[%c0_16, %c0_17, %c0_18] : memref<3x16x64xf32, #tpu.memory_space<vmem>>, vector<1x16x64xf32>
    %18 = vector.shape_cast %17 : vector<1x16x64xf32> to vector<16x64xf32>
    %cst_19 = arith.constant dense<0.000000e+00> : vector<16x64xf32>
    %19 = tpu.matmul %14, %18, %cst_19 {dimension_numbers = #tpu.dot_dimension_numbers<[1], [0], [0], [1], [0, 0, 1, 1], [], []>} : vector<16x16xf32>, vector<16x64xf32>, vector<16x64xf32> -> vector<16x64xf32>
    %c1_20 = arith.constant 1 : index
    %c0_21 = arith.constant 0 : index
    %c0_22 = arith.constant 0 : index
    %20 = vector.load %arg6[%c1_20, %c0_21, %c0_22] : memref<3x16x64xf32, #tpu.memory_space<vmem>>, vector<1x16x64xf32>
    %21 = vector.shape_cast %20 : vector<1x16x64xf32> to vector<16x64xf32>
    %cst_23 = arith.constant dense<0.000000e+00> : vector<16x64xf32>
    %22 = tpu.matmul %16, %21, %cst_23 {dimension_numbers = #tpu.dot_dimension_numbers<[1], [0], [0], [1], [0, 0, 1, 1], [], []>} : vector<16x16xf32>, vector<16x64xf32>, vector<16x64xf32> -> vector<16x64xf32>
    %23 = arith.addf %14, %16 : vector<16x16xf32>
    %c2_24 = arith.constant 2 : index
    %c0_25 = arith.constant 0 : index
    %c0_26 = arith.constant 0 : index
    %24 = vector.load %arg6[%c2_24, %c0_25, %c0_26] : memref<3x16x64xf32, #tpu.memory_space<vmem>>, vector<1x16x64xf32>
    %25 = vector.shape_cast %24 : vector<1x16x64xf32> to vector<16x64xf32>
    %cst_27 = arith.constant dense<0.000000e+00> : vector<16x64xf32>
    %26 = tpu.matmul %23, %25, %cst_27 {dimension_numbers = #tpu.dot_dimension_numbers<[1], [0], [0], [1], [0, 0, 1, 1], [], []>} : vector<16x16xf32>, vector<16x64xf32>, vector<16x64xf32> -> vector<16x64xf32>
    %27 = arith.subf %19, %22 : vector<16x64xf32>
    %28 = arith.subf %26, %19 : vector<16x64xf32>
    %29 = arith.subf %28, %22 : vector<16x64xf32>
    %c0_28 = arith.constant 0 : index
    %c0_29 = arith.constant 0 : index
    %30 = vector.load %arg4[%c0_28, %c0_29] : memref<16x64xf32, #tpu.memory_space<vmem>>, vector<16x64xf32>
    %c0_30 = arith.constant 0 : index
    %c0_31 = arith.constant 0 : index
    %c0_32 = arith.constant 0 : index
    %c0_33 = arith.constant 0 : index
    %31 = vector.load %arg2[%c0_30, %c0_31, %c0_32, %c0_33] : memref<1x2x16x64xf32, #tpu.memory_space<vmem>>, vector<1x1x16x64xf32>
    %32 = vector.shape_cast %31 : vector<1x1x16x64xf32> to vector<16x64xf32>
    %c0_34 = arith.constant 0 : index
    %c0_35 = arith.constant 0 : index
    %c0_36 = arith.constant 0 : index
    %c0_37 = arith.constant 0 : index
    %33 = vector.load %arg3[%c0_34, %c0_35, %c0_36, %c0_37] : memref<1x2x16x64xf32, #tpu.memory_space<vmem>>, vector<1x1x16x64xf32>
    %34 = vector.shape_cast %33 : vector<1x1x16x64xf32> to vector<16x64xf32>
    %35 = arith.subf %27, %34 : vector<16x64xf32>
    %36 = arith.mulf %30, %35 : vector<16x64xf32>
    %37 = arith.subf %32, %36 : vector<16x64xf32>
    %38 = arith.subf %37, %27 : vector<16x64xf32>
    %c0_38 = arith.constant 0 : index
    %c1_39 = arith.constant 1 : index
    %c0_40 = arith.constant 0 : index
    %c0_41 = arith.constant 0 : index
    %39 = vector.load %arg2[%c0_38, %c1_39, %c0_40, %c0_41] : memref<1x2x16x64xf32, #tpu.memory_space<vmem>>, vector<1x1x16x64xf32>
    %40 = vector.shape_cast %39 : vector<1x1x16x64xf32> to vector<16x64xf32>
    %c0_42 = arith.constant 0 : index
    %c1_43 = arith.constant 1 : index
    %c0_44 = arith.constant 0 : index
    %c0_45 = arith.constant 0 : index
    %41 = vector.load %arg3[%c0_42, %c1_43, %c0_44, %c0_45] : memref<1x2x16x64xf32, #tpu.memory_space<vmem>>, vector<1x1x16x64xf32>
    %42 = vector.shape_cast %41 : vector<1x1x16x64xf32> to vector<16x64xf32>
    %43 = arith.subf %29, %42 : vector<16x64xf32>
    %44 = arith.mulf %30, %43 : vector<16x64xf32>
    %45 = arith.subf %40, %44 : vector<16x64xf32>
    %46 = arith.subf %45, %29 : vector<16x64xf32>
    %c0_46 = arith.constant 0 : index
    %c0_47 = arith.constant 0 : index
    %c0_48 = arith.constant 0 : index
    %47 = vector.load %arg7[%c0_46, %c0_47, %c0_48] : memref<3x16x16xf32, #tpu.memory_space<vmem>>, vector<1x16x16xf32>
    %48 = vector.shape_cast %47 : vector<1x16x16xf32> to vector<16x16xf32>
    %cst_49 = arith.constant dense<0.000000e+00> : vector<16x64xf32>
    %49 = tpu.matmul %48, %38, %cst_49 {dimension_numbers = #tpu.dot_dimension_numbers<[1], [0], [0], [1], [0, 0, 1, 1], [], []>} : vector<16x16xf32>, vector<16x64xf32>, vector<16x64xf32> -> vector<16x64xf32>
    %c1_50 = arith.constant 1 : index
    %c0_51 = arith.constant 0 : index
    %c0_52 = arith.constant 0 : index
    %50 = vector.load %arg7[%c1_50, %c0_51, %c0_52] : memref<3x16x16xf32, #tpu.memory_space<vmem>>, vector<1x16x16xf32>
    %51 = vector.shape_cast %50 : vector<1x16x16xf32> to vector<16x16xf32>
    %cst_53 = arith.constant dense<0.000000e+00> : vector<16x64xf32>
    %52 = tpu.matmul %51, %46, %cst_53 {dimension_numbers = #tpu.dot_dimension_numbers<[1], [0], [0], [1], [0, 0, 1, 1], [], []>} : vector<16x16xf32>, vector<16x64xf32>, vector<16x64xf32> -> vector<16x64xf32>
    %c2_54 = arith.constant 2 : index
    %c0_55 = arith.constant 0 : index
    %c0_56 = arith.constant 0 : index
    %53 = vector.load %arg7[%c2_54, %c0_55, %c0_56] : memref<3x16x16xf32, #tpu.memory_space<vmem>>, vector<1x16x16xf32>
    %54 = vector.shape_cast %53 : vector<1x16x16xf32> to vector<16x16xf32>
    %55 = arith.addf %38, %46 : vector<16x64xf32>
    %cst_57 = arith.constant dense<0.000000e+00> : vector<16x64xf32>
    %56 = tpu.matmul %54, %55, %cst_57 {dimension_numbers = #tpu.dot_dimension_numbers<[1], [0], [0], [1], [0, 0, 1, 1], [], []>} : vector<16x16xf32>, vector<16x64xf32>, vector<16x64xf32> -> vector<16x64xf32>
    %57 = arith.subf %49, %52 : vector<16x64xf32>
    %58 = arith.subf %56, %49 : vector<16x64xf32>
    %59 = arith.subf %58, %52 : vector<16x64xf32>
    %c0_58 = arith.constant 0 : index
    %c0_59 = arith.constant 0 : index
    %c0_60 = arith.constant 0 : index
    %60 = vector.load %arg8[%c0_58, %c0_59, %c0_60] : memref<2x64x128xf32, #tpu.memory_space<vmem>>, vector<1x64x128xf32>
    %61 = vector.shape_cast %60 : vector<1x64x128xf32> to vector<64x128xf32>
    %cst_61 = arith.constant dense<0.000000e+00> : vector<16x128xf32>
    %62 = tpu.matmul %57, %61, %cst_61 {dimension_numbers = #tpu.dot_dimension_numbers<[1], [0], [0], [1], [0, 0, 1, 1], [], []>} : vector<16x64xf32>, vector<64x128xf32>, vector<16x128xf32> -> vector<16x128xf32>
    %c1_62 = arith.constant 1 : index
    %c0_63 = arith.constant 0 : index
    %c0_64 = arith.constant 0 : index
    %63 = vector.load %arg8[%c1_62, %c0_63, %c0_64] : memref<2x64x128xf32, #tpu.memory_space<vmem>>, vector<1x64x128xf32>
    %64 = vector.shape_cast %63 : vector<1x64x128xf32> to vector<64x128xf32>
    %cst_65 = arith.constant dense<0.000000e+00> : vector<16x128xf32>
    %65 = tpu.matmul %59, %64, %cst_65 {dimension_numbers = #tpu.dot_dimension_numbers<[1], [0], [0], [1], [0, 0, 1, 1], [], []>} : vector<16x64xf32>, vector<64x128xf32>, vector<16x128xf32> -> vector<16x128xf32>
    %66 = arith.addf %62, %65 : vector<16x128xf32>
    %c0_66 = arith.constant 0 : index
    %c0_67 = arith.constant 0 : index
    %c0_68 = arith.constant 0 : index
    %67 = vector.load %arg9[%c0_66, %c0_67, %c0_68] : memref<1x16x128xf32, #tpu.memory_space<vmem>>, vector<1x16x128xf32>
    %68 = vector.shape_cast %67 : vector<1x16x128xf32> to vector<16x128xf32>
    %69 = vector.shape_cast %66 : vector<16x128xf32> to vector<1x16x128xf32>
    tpu.vector_store %arg9[%c0_66, %c0_67, %c0_68], %69 {strides = array<i32>} : memref<1x16x128xf32, #tpu.memory_space<vmem>>, vector<1x16x128xf32>,
    return
  }
  func.func @transform_0(%arg0: i32) -> (i32, i32, i32, i32) {
    %c0_i32 = arith.constant 0 : i32
    %c0_i32_0 = arith.constant 0 : i32
    %c0_i32_1 = arith.constant 0 : i32
    %c0_i32_2 = arith.constant 0 : i32
    return %arg0, %c0_i32, %c0_i32_0, %c0_i32_1 : i32, i32, i32, i32
  }
  func.func @transform_1(%arg0: i32) -> (i32, i32, i32, i32) {
    %c0_i32 = arith.constant 0 : i32
    %c0_i32_0 = arith.constant 0 : i32
    %c0_i32_1 = arith.constant 0 : i32
    %c0_i32_2 = arith.constant 0 : i32
    return %arg0, %c0_i32, %c0_i32_0, %c0_i32_1 : i32, i32, i32, i32
  }
  func.func @transform_2(%arg0: i32) -> (i32, i32, i32, i32) {
    %c0_i32 = arith.constant 0 : i32
    %c0_i32_0 = arith.constant 0 : i32
    %c0_i32_1 = arith.constant 0 : i32
    %c0_i32_2 = arith.constant 0 : i32
    return %arg0, %c0_i32, %c0_i32_0, %c0_i32_1 : i32, i32, i32, i32
  }
  func.func @transform_3(%arg0: i32) -> (i32, i32) {
    %c0_i32 = arith.constant 0 : i32
    %c0_i32_0 = arith.constant 0 : i32
    %c0_i32_1 = arith.constant 0 : i32
    return %c0_i32, %c0_i32_0 : i32, i32
  }
  func.func @transform_4(%arg0: i32) -> (i32, i32, i32) {
    %c0_i32 = arith.constant 0 : i32
    %c0_i32_0 = arith.constant 0 : i32
    %c0_i32_1 = arith.constant 0 : i32
    %c0_i32_2 = arith.constant 0 : i32
    return %c0_i32, %c0_i32_0, %c0_i32_1 : i32, i32, i32
  }
  func.func @transform_5(%arg0: i32) -> (i32, i32, i32) {
    %c0_i32 = arith.constant 0 : i32
    %c0_i32_0 = arith.constant 0 : i32
    %c0_i32_1 = arith.constant 0 : i32
    %c0_i32_2 = arith.constant 0 : i32
    return %c0_i32, %c0_i32_0, %c0_i32_1 : i32, i32, i32
  }
  func.func @transform_6(%arg0: i32) -> (i32, i32, i32) {
    %c0_i32 = arith.constant 0 : i32
    %c0_i32_0 = arith.constant 0 : i32
    %c0_i32_1 = arith.constant 0 : i32
    %c0_i32_2 = arith.constant 0 : i32
    return %c0_i32, %c0_i32_0, %c0_i32_1 : i32, i32, i32
  }
  func.func @transform_7(%arg0: i32) -> (i32, i32, i32) {
    %c0_i32 = arith.constant 0 : i32
    %c0_i32_0 = arith.constant 0 : i32
    %c0_i32_1 = arith.constant 0 : i32
    %c0_i32_2 = arith.constant 0 : i32
    return %c0_i32, %c0_i32_0, %c0_i32_1 : i32, i32, i32
  }
  func.func @transform_8(%arg0: i32) -> (i32, i32, i32) {
    %c0_i32 = arith.constant 0 : i32
    %c0_i32_0 = arith.constant 0 : i32
    %c0_i32_1 = arith.constant 0 : i32
    return %arg0, %c0_i32, %c0_i32_0 : i32, i32, i32
  }
}

</mosaic_0001>

<llo_original>
// kernel: tpu_custom_call.1
$region0: #{tpu_custom_call.1}
  #allocation0 [shape = 'u32[]', space=smem, size = 0x4, offset = 0x4, fixed_abs, tag = 'smem constant byte address 0x4 - core index']
  #allocation1 [shape = 'u32[144,128]{1,0:T(1,128)}', space=vmem, size = 0x12000, scoped, tag = 'internal scratch']
  %s0 = inlined_call_operand.hbm [shape: f32[2,2,16,16], index: 0, kind: input, shape index: {}]
  %s1 = inlined_call_operand.hbm [shape: f32[2,2,16,64], index: 1, kind: input, shape index: {}]
  %s2 = inlined_call_operand.hbm [shape: f32[2,2,16,64], index: 2, kind: input, shape index: {}]
  %s3 = inlined_call_operand.hbm [shape: f32[16,64], index: 3, kind: input, shape index: {}]
  %s4 = inlined_call_operand.hbm [shape: f32[3,16,16], index: 4, kind: input, shape index: {}]
  %s5 = inlined_call_operand.hbm [shape: f32[3,16,64], index: 5, kind: input, shape index: {}]
  %s6 = inlined_call_operand.hbm [shape: f32[3,16,16], index: 6, kind: input, shape index: {}]
  %s7 = inlined_call_operand.hbm [shape: f32[2,64,128], index: 7, kind: input, shape index: {}]
  %s8 = inlined_call_operand.hbm [shape: f32[2,16,128], index: 8, kind: output, shape index: {}]
  %s9 = sld [smem:[#allocation0]]
  $region97: #{tpu_custom_call.1} parent=0
    _
  %s11 = ssub.s32 1, %s9
  %s12 = scalar_select 0, %s11, %s9
  $region1: #{tpu_custom_call.1} parent=0
    #allocation2 [shape = 'u8[32768]{0}', space=vmem, size = 0x8000, scoped, tag = 'input window, operand 0']
    #allocation3 [shape = 's32[2]{0}', space=sflag, size = 0x8, scoped, tag = 'scoped memory for tpu_custom_call.1']
    #allocation4 [shape = 's32[2]{0}', space=sflag, size = 0x8, scoped, tag = 'scoped memory for tpu_custom_call.1']
    #allocation5 [shape = 'u8[32768]{0}', space=vmem, size = 0x8000, scoped, tag = 'input window, operand 1']
    #allocation6 [shape = 's32[2]{0}', space=sflag, size = 0x8, scoped, tag = 'scoped memory for tpu_custom_call.1']
    #allocation7 [shape = 'u8[32768]{0}', space=vmem, size = 0x8000, scoped, tag = 'input window, operand 2']
    #allocation8 [shape = 'u8[8192]{0}', space=vmem, size = 0x2000, scoped, tag = 'input window, operand 3, single buffered']
    #allocation9 [shape = 's32[1]{0}', space=sflag, size = 0x4, scoped, tag = 'scoped memory for tpu_custom_call.1']
    #allocation10 [shape = 'u8[24576]{0}', space=vmem, size = 0x6000, scoped, tag = 'input window, operand 4, single buffered']
    #allocation11 [shape = 'u8[24576]{0}', space=vmem, size = 0x6000, scoped, tag = 'input window, operand 5, single buffered']
    #allocation12 [shape = 's32[1]{0}', space=sflag, size = 0x4, scoped, tag = 'scoped memory for tpu_custom_call.1']
    #allocation13 [shape = 'u8[24576]{0}', space=vmem, size = 0x6000, scoped, tag = 'input window, operand 6, single buffered']
    #allocation14 [shape = 'u8[65536]{0}', space=vmem, size = 0x10000, scoped, tag = 'input window, operand 7, single buffered']
    #allocation15 [shape = 's32[1]{0}', space=sflag, size = 0x4, scoped, tag = 'scoped memory for tpu_custom_call.1']
    #allocation16 [shape = 'u8[16384]{0}', space=vmem, size = 0x4000, scoped, tag = 'output window, operand 0']
    %13 = vsyncpa [#allocation3], 0
    %s14 = scalar_lea.sflag [#allocation3], 1
    %15 = vsyncpa %s14, 0
    %16 = vsyncpa [#allocation6], 0
    %s17 = scalar_lea.sflag [#allocation6], 1
    %18 = vsyncpa %s17, 0
    %19 = vsyncpa [#allocation9], 0
    %20 = vsyncpa [#allocation12], 0
    %21 = vsyncpa [#allocation15], 0
    %22 = vsyncpa [#allocation4], 0
    %s23 = scalar_lea.sflag [#allocation4], 1
    %24 = vsyncpa %s23, 0
    loop: start=0, step=1, limit=4
    $region2: #{tpu_custom_call.1} parent=1 // loop_pre_header
      _
    $region3: #{tpu_custom_call.1} parent=1 // loop_header
      %s26 = sphi 0, %s30
      %p27 = scmp.ge.s32.totalorder %s26, 4
      %s36 = sphi 0, %s38
      %s39 = sphi 0, %s36
      %s40 = sphi 0, %s39
      %s56 = sphi 0, %s40
      %s62 = sphi 0, %s64
      %s65 = sphi 0, %s62
      %s66 = sphi 0, %s65
      %s82 = sphi 0, %s66
      %s88 = sphi 0, %s90
      %s91 = sphi 0, %s88
      %s92 = sphi 0, %s91
      %s108 = sphi 0, %s92
      %s112 = sphi 0, %s112
      %s114 = sphi 0, %s112
      %s115 = sphi 0, %s114
      %s129 = sphi 0, %s115
      %s133 = sphi 0, %s133
      %s135 = sphi 0, %s133
      %s136 = sphi 0, %s135
      %s150 = sphi 0, %s136
      %s154 = sphi 0, %s154
      %s156 = sphi 0, %s154
      %s157 = sphi 0, %s156
      %s171 = sphi 0, %s157
      %s175 = sphi 0, %s175
      %s177 = sphi 0, %s175
      %s178 = sphi 0, %s177
      %s192 = sphi 0, %s178
      %s196 = sphi 0, %s196
      %s198 = sphi 0, %s196
      %s199 = sphi 0, %s198
      %s213 = sphi 0, %s199
      %s219 = sphi 0, %s221
      %s222 = sphi 0, %s219
      %s223 = sphi 0, %s222
      %s239 = sphi 0, %s223
    $region4: #{tpu_custom_call.1} parent=1 // loop_header_branch
      %29 = sbr.rel (%p27) target = $region8
    $region5: #{tpu_custom_call.1} parent=1 // loop_body
      %s31 = ssub.s32 %s26, 1
      %s32 = ssub.s32 %s26, 2
      %s33 = sadd.s32 %s26, 1
      %s34 = ssub.s32 %s26, %s33
      %p35 = scmp.eq.s32.totalorder %s34, 0
      %s37 = sadd.s32 %s36, 1
      %s38 = scalar_select %p35, %s36, %s37
      %p41 = pneg %p35
      %p42 = scmp.eq.s32.totalorder %s26, 1
      %p43 = por %p41, %p42
      %p44 = scmp.ne.s32.totalorder %s36, %s39
      %p45 = scmp.eq.s32.totalorder %s26, 0
      %p46 = por %p44, %p45
      %p47 = scmp.ne.s32.totalorder %s36, %s39
      %p48 = scmp.eq.s32.totalorder %s31, 1
      %p49 = por %p47, %p48
      %p50 = scmp.ne.s32.totalorder %s39, %s40
      %p51 = scmp.eq.s32.totalorder %s31, 0
      %p52 = por %p50, %p51
      %p53 = scmp.ne.s32.totalorder %s39, %s40
      %p54 = scmp.eq.s32.totalorder %s32, 1
      %p55 = por %p53, %p54
      %p57 = scmp.ne.s32.totalorder %s40, %s56
      %p58 = scmp.eq.s32.totalorder %s32, 0
      %p59 = por %p57, %p58
      %s60 = ssub.s32 %s26, %s33
      %p61 = scmp.eq.s32.totalorder %s60, 0
      %s63 = sadd.s32 %s62, 1
      %s64 = scalar_select %p61, %s62, %s63
      %p67 = pneg %p61
      %p68 = scmp.eq.s32.totalorder %s26, 1
      %p69 = por %p67, %p68
      %p70 = scmp.ne.s32.totalorder %s62, %s65
      %p71 = scmp.eq.s32.totalorder %s26, 0
      %p72 = por %p70, %p71
      %p73 = scmp.ne.s32.totalorder %s62, %s65
      %p74 = scmp.eq.s32.totalorder %s31, 1
      %p75 = por %p73, %p74
      %p76 = scmp.ne.s32.totalorder %s65, %s66
      %p77 = scmp.eq.s32.totalorder %s31, 0
      %p78 = por %p76, %p77
      %p79 = scmp.ne.s32.totalorder %s65, %s66
      %p80 = scmp.eq.s32.totalorder %s32, 1
      %p81 = por %p79, %p80
      %p83 = scmp.ne.s32.totalorder %s66, %s82
      %p84 = scmp.eq.s32.totalorder %s32, 0
      %p85 = por %p83, %p84
      %s86 = ssub.s32 %s26, %s33
      %p87 = scmp.eq.s32.totalorder %s86, 0
      %s89 = sadd.s32 %s88, 1
      %s90 = scalar_select %p87, %s88, %s89
      %p93 = pneg %p87
      %p94 = scmp.eq.s32.totalorder %s26, 1
      %p95 = por %p93, %p94
      %p96 = scmp.ne.s32.totalorder %s88, %s91
      %p97 = scmp.eq.s32.totalorder %s26, 0
      %p98 = por %p96, %p97
      %p99 = scmp.ne.s32.totalorder %s88, %s91
      %p100 = scmp.eq.s32.totalorder %s31, 1
      %p101 = por %p99, %p100
      %p102 = scmp.ne.s32.totalorder %s91, %s92
      %p103 = scmp.eq.s32.totalorder %s31, 0
      %p104 = por %p102, %p103
      %p105 = scmp.ne.s32.totalorder %s91, %s92
      %p106 = scmp.eq.s32.totalorder %s32, 1
      %p107 = por %p105, %p106
      %p109 = scmp.ne.s32.totalorder %s92, %s108
      %p110 = scmp.eq.s32.totalorder %s32, 0
      %p111 = por %p109, %p110
      %s113 = sadd.s32 %s112, 1
      %p116 = scmp.eq.s32.totalorder %s26, 1
      %p117 = scmp.ne.s32.totalorder %s112, %s114
      %p118 = scmp.eq.s32.totalorder %s26, 0
      %p119 = por %p117, %p118
      %p120 = scmp.ne.s32.totalorder %s112, %s114
      %p121 = scmp.eq.s32.totalorder %s31, 1
      %p122 = por %p120, %p121
      %p123 = scmp.ne.s32.totalorder %s114, %s115
      %p124 = scmp.eq.s32.totalorder %s31, 0
      %p125 = por %p123, %p124
      %p126 = scmp.ne.s32.totalorder %s114, %s115
      %p127 = scmp.eq.s32.totalorder %s32, 1
      %p128 = por %p126, %p127
      %p130 = scmp.ne.s32.totalorder %s115, %s129
      %p131 = scmp.eq.s32.totalorder %s32, 0
      %p132 = por %p130, %p131
      %s134 = sadd.s32 %s133, 1
      %p137 = scmp.eq.s32.totalorder %s26, 1
      %p138 = scmp.ne.s32.totalorder %s133, %s135
      %p139 = scmp.eq.s32.totalorder %s26, 0
      %p140 = por %p138, %p139
      %p141 = scmp.ne.s32.totalorder %s133, %s135
      %p142 = scmp.eq.s32.totalorder %s31, 1
      %p143 = por %p141, %p142
      %p144 = scmp.ne.s32.totalorder %s135, %s136
      %p145 = scmp.eq.s32.totalorder %s31, 0
      %p146 = por %p144, %p145
      %p147 = scmp.ne.s32.totalorder %s135, %s136
      %p148 = scmp.eq.s32.totalorder %s32, 1
      %p149 = por %p147, %p148
      %p151 = scmp.ne.s32.totalorder %s136, %s150
      %p152 = scmp.eq.s32.totalorder %s32, 0
      %p153 = por %p151, %p152
      %s155 = sadd.s32 %s154, 1
      %p158 = scmp.eq.s32.totalorder %s26, 1
      %p159 = scmp.ne.s32.totalorder %s154, %s156
      %p160 = scmp.eq.s32.totalorder %s26, 0
      %p161 = por %p159, %p160
      %p162 = scmp.ne.s32.totalorder %s154, %s156
      %p163 = scmp.eq.s32.totalorder %s31, 1
      %p164 = por %p162, %p163
      %p165 = scmp.ne.s32.totalorder %s156, %s157
      %p166 = scmp.eq.s32.totalorder %s31, 0
      %p167 = por %p165, %p166
      %p168 = scmp.ne.s32.totalorder %s156, %s157
      %p169 = scmp.eq.s32.totalorder %s32, 1
      %p170 = por %p168, %p169
      %p172 = scmp.ne.s32.totalorder %s157, %s171
      %p173 = scmp.eq.s32.totalorder %s32, 0
      %p174 = por %p172, %p173
      %s176 = sadd.s32 %s175, 1
      %p179 = scmp.eq.s32.totalorder %s26, 1
      %p180 = scmp.ne.s32.totalorder %s175, %s177
      %p181 = scmp.eq.s32.totalorder %s26, 0
      %p182 = por %p180, %p181
      %p183 = scmp.ne.s32.totalorder %s175, %s177
      %p184 = scmp.eq.s32.totalorder %s31, 1
      %p185 = por %p183, %p184
      %p186 = scmp.ne.s32.totalorder %s177, %s178
      %p187 = scmp.eq.s32.totalorder %s31, 0
      %p188 = por %p186, %p187
      %p189 = scmp.ne.s32.totalorder %s177, %s178
      %p190 = scmp.eq.s32.totalorder %s32, 1
      %p191 = por %p189, %p190
      %p193 = scmp.ne.s32.totalorder %s178, %s192
      %p194 = scmp.eq.s32.totalorder %s32, 0
      %p195 = por %p193, %p194
      %s197 = sadd.s32 %s196, 1
      %p200 = scmp.eq.s32.totalorder %s26, 1
      %p201 = scmp.ne.s32.totalorder %s196, %s198
      %p202 = scmp.eq.s32.totalorder %s26, 0
      %p203 = por %p201, %p202
      %p204 = scmp.ne.s32.totalorder %s196, %s198
      %p205 = scmp.eq.s32.totalorder %s31, 1
      %p206 = por %p204, %p205
      %p207 = scmp.ne.s32.totalorder %s198, %s199
      %p208 = scmp.eq.s32.totalorder %s31, 0
      %p209 = por %p207, %p208
      %p210 = scmp.ne.s32.totalorder %s198, %s199
      %p211 = scmp.eq.s32.totalorder %s32, 1
      %p212 = por %p210, %p211
      %p214 = scmp.ne.s32.totalorder %s199, %s213
      %p215 = scmp.eq.s32.totalorder %s32, 0
      %p216 = por %p214, %p215
      %s217 = ssub.s32 %s26, %s33
      %p218 = scmp.eq.s32.totalorder %s217, 0
      %s220 = sadd.s32 %s219, 1
      %s221 = scalar_select %p218, %s219, %s220
      %p224 = pneg %p218
      %p225 = scmp.eq.s32.totalorder %s26, 1
      %p226 = por %p224, %p225
      %p227 = scmp.ne.s32.totalorder %s219, %s222
      %p228 = scmp.eq.s32.totalorder %s26, 0
      %p229 = por %p227, %p228
      %p230 = scmp.ne.s32.totalorder %s219, %s222
      %p231 = scmp.eq.s32.totalorder %s31, 1
      %p232 = por %p230, %p231
      %p233 = scmp.ne.s32.totalorder %s222, %s223
      %p234 = scmp.eq.s32.totalorder %s31, 0
      %p235 = por %p233, %p234
      %p236 = scmp.ne.s32.totalorder %s222, %s223
      %p237 = scmp.eq.s32.totalorder %s32, 1
      %p238 = por %p236, %p237
      %p240 = scmp.ne.s32.totalorder %s223, %s239
      %p241 = scmp.eq.s32.totalorder %s32, 0
      %p242 = por %p240, %p241
      %p243 = scmp.le.s32.totalorder 1, %s26
      %p244 = scmp.lt.s32.totalorder %s26, 3
      %p245 = pnand %p243, %p244
      %p246 = pneg %p245
      // Predicated region
      $region9: #{tpu_custom_call.1} parent=5 // pred_check
        _
      $region10: #{tpu_custom_call.1} parent=5 // pred_check_branch
        %248 = sbr.rel (%p245) target = $region12
      $region11: #{tpu_custom_call.1} parent=5 // pred_region
        %s249 = ssub.s32 %s26, 1
        // Predicated region
        $region13: #{tpu_custom_call.1} parent=11 // pred_check
          %p250 = pneg %p125
        $region14: #{tpu_custom_call.1} parent=11 // pred_check_branch
          %252 = sbr.rel (%p250) target = $region16
        $region15: #{tpu_custom_call.1} parent=11 // pred_region
          %s254 = ssub.s32 256, 256
          %255 = vsyncadd [#allocation9], %s254
          %s256 = sshll.u32 [#allocation8], 4
          %s257 = int_to_ptr.vmem [resolvable:$true] %s256
          %262 = dma.hbm_to_vmem [thread:$0]  %s3, 256, %s257, [#allocation9], 128, 128, 8
        $region16: #{tpu_custom_call.1} parent=11 // pred_fallthru
          _
        // Predicated region
        $region17: #{tpu_custom_call.1} parent=11 // pred_check
          %p263 = pneg %p146
        $region18: #{tpu_custom_call.1} parent=11 // pred_check_branch
          %265 = sbr.rel (%p263) target = $region20
        $region19: #{tpu_custom_call.1} parent=11 // pred_region
          %s267 = ssub.s32 768, 768
          %268 = vsyncadd [#allocation9], %s267
          %s269 = sshll.u32 [#allocation10], 4
          %s270 = int_to_ptr.vmem [resolvable:$true] %s269
          %275 = dma.hbm_to_vmem [thread:$0]  %s4, 768, %s270, [#allocation9], 128, 128, 8
        $region20: #{tpu_custom_call.1} parent=11 // pred_fallthru
          _
        // Predicated region
        $region21: #{tpu_custom_call.1} parent=11 // pred_check
          %p276 = pneg %p167
        $region22: #{tpu_custom_call.1} parent=11 // pred_check_branch
          %278 = sbr.rel (%p276) target = $region24
        $region23: #{tpu_custom_call.1} parent=11 // pred_region
          %s280 = ssub.s32 768, 768
          %281 = vsyncadd [#allocation12], %s280
          %s282 = sshll.u32 [#allocation11], 4
          %s283 = int_to_ptr.vmem [resolvable:$true] %s282
          %288 = dma.hbm_to_vmem [thread:$0]  %s5, 768, %s283, [#allocation12], 128, 128, 8
        $region24: #{tpu_custom_call.1} parent=11 // pred_fallthru
          _
        // Predicated region
        $region25: #{tpu_custom_call.1} parent=11 // pred_check
          %p289 = pneg %p188
        $region26: #{tpu_custom_call.1} parent=11 // pred_check_branch
          %291 = sbr.rel (%p289) target = $region28
        $region27: #{tpu_custom_call.1} parent=11 // pred_region
          %s293 = ssub.s32 768, 768
          %294 = vsyncadd [#allocation12], %s293
          %s295 = sshll.u32 [#allocation13], 4
          %s296 = int_to_ptr.vmem [resolvable:$true] %s295
          %301 = dma.hbm_to_vmem [thread:$0]  %s6, 768, %s296, [#allocation12], 128, 128, 8
        $region28: #{tpu_custom_call.1} parent=11 // pred_fallthru
          _
        // Predicated region
        $region29: #{tpu_custom_call.1} parent=11 // pred_check
          %p302 = pneg %p209
        $region30: #{tpu_custom_call.1} parent=11 // pred_check_branch
          %304 = sbr.rel (%p302) target = $region32
        $region31: #{tpu_custom_call.1} parent=11 // pred_region
          %s306 = ssub.s32 2048, 2048
          %307 = vsyncadd [#allocation15], %s306
          %s308 = sshll.u32 [#allocation14], 4
          %s309 = int_to_ptr.vmem [resolvable:$true] %s308
          %314 = dma.hbm_to_vmem [thread:$0]  %s7, 2048, %s309, [#allocation15], 128, 128, 8
        $region32: #{tpu_custom_call.1} parent=11 // pred_fallthru
          _
      $region12: #{tpu_custom_call.1} parent=5 // pred_fallthru
        _
      %p315 = scmp.lt.s32.totalorder %s26, 2
      // Predicated region
      $region33: #{tpu_custom_call.1} parent=5 // pred_check
        %p316 = pneg %p315
      $region34: #{tpu_custom_call.1} parent=5 // pred_check_branch
        %318 = sbr.rel (%p316) target = $region36
      $region35: #{tpu_custom_call.1} parent=5 // pred_region
        // Predicated region
        $region37: #{tpu_custom_call.1} parent=35 // pred_check
          %p319 = pneg %p46
        $region38: #{tpu_custom_call.1} parent=35 // pred_check_branch
          %321 = sbr.rel (%p319) target = $region40
        $region39: #{tpu_custom_call.1} parent=35 // pred_region
          %s322 = sand.u32 %s36, 1
          %s323 = scalar_lea.sflag [#allocation3], %s322
          %s324 = sand.u32 %s36, 1
          %s325 = smul.addr %s324, 32
          %s326 = scalar_lea.vmem [#allocation2], %s325
          %s328 = ssub.s32 512, 512
          %329 = vsyncadd %s323, %s328
          %s330 = smul.addr %s26, 4
          %s331 = smul.addr %s330, 128
          %s332 = scalar_lea.hbm %s0, %s331
          %s333 = sshll.u32 %s326, 4
          %s334 = int_to_ptr.vmem [resolvable:$true] %s333
          %339 = dma.hbm_to_vmem [thread:$0]  %s332, 512, %s334, %s323, 128, 128, 8
        $region40: #{tpu_custom_call.1} parent=35 // pred_fallthru
          _
        // Predicated region
        $region41: #{tpu_custom_call.1} parent=35 // pred_check
          %p340 = pneg %p72
        $region42: #{tpu_custom_call.1} parent=35 // pred_check_branch
          %342 = sbr.rel (%p340) target = $region44
        $region43: #{tpu_custom_call.1} parent=35 // pred_region
          %s343 = sand.u32 %s26, 1
          %s344 = scalar_lea.sflag [#allocation6], %s343
          %s345 = sand.u32 %s62, 1
          %s346 = smul.addr %s345, 32
          %s347 = scalar_lea.vmem [#allocation5], %s346
          %s349 = ssub.s32 512, 512
          %350 = vsyncadd %s344, %s349
          %s351 = smul.addr %s26, 4
          %s352 = smul.addr %s351, 128
          %s353 = scalar_lea.hbm %s1, %s352
          %s354 = sshll.u32 %s347, 4
          %s355 = int_to_ptr.vmem [resolvable:$true] %s354
          %360 = dma.hbm_to_vmem [thread:$0]  %s353, 512, %s355, %s344, 128, 128, 8
        $region44: #{tpu_custom_call.1} parent=35 // pred_fallthru
          _
        // Predicated region
        $region45: #{tpu_custom_call.1} parent=35 // pred_check
          %p361 = pneg %p98
        $region46: #{tpu_custom_call.1} parent=35 // pred_check_branch
          %363 = sbr.rel (%p361) target = $region48
        $region47: #{tpu_custom_call.1} parent=35 // pred_region
          %s364 = sand.u32 %s26, 1
          %s365 = scalar_lea.sflag [#allocation6], %s364
          %s366 = sand.u32 %s88, 1
          %s367 = smul.addr %s366, 32
          %s368 = scalar_lea.vmem [#allocation7], %s367
          %s370 = ssub.s32 512, 512
          %371 = vsyncadd %s365, %s370
          %s372 = smul.addr %s26, 4
          %s373 = smul.addr %s372, 128
          %s374 = scalar_lea.hbm %s2, %s373
          %s375 = sshll.u32 %s368, 4
          %s376 = int_to_ptr.vmem [resolvable:$true] %s375
          %381 = dma.hbm_to_vmem [thread:$0]  %s374, 512, %s376, %s365, 128, 128, 8
        $region48: #{tpu_custom_call.1} parent=35 // pred_fallthru
          _
      $region36: #{tpu_custom_call.1} parent=5 // pred_fallthru
        _
      %p382 = scmp.le.s32.totalorder 1, %s26
      %p383 = scmp.lt.s32.totalorder %s26, 3
      %p384 = pnand %p382, %p383
      %p385 = pneg %p384
      // Predicated region
      $region49: #{tpu_custom_call.1} parent=5 // pred_check
        _
      $region50: #{tpu_custom_call.1} parent=5 // pred_check_branch
        %387 = sbr.rel (%p384) target = $region52
      $region51: #{tpu_custom_call.1} parent=5 // pred_region
        %s388 = ssub.s32 %s26, 1
        %s389 = sand.u32 %s39, 1
        %s390 = scalar_lea.sflag [#allocation3], %s389
        %s391 = sand.u32 %s39, 1
        %s392 = smul.addr %s391, 32
        %s393 = scalar_lea.vmem [#allocation2], %s392
        // Predicated region
        $region53: #{tpu_custom_call.1} parent=51 // pred_check
          %p394 = pneg %p52
        $region54: #{tpu_custom_call.1} parent=51 // pred_check_branch
          %396 = sbr.rel (%p394) target = $region56
        $region55: #{tpu_custom_call.1} parent=51 // pred_region
          %397 = dma.done %s390, 512
        $region56: #{tpu_custom_call.1} parent=51 // pred_fallthru
          _
        %s398 = sand.u32 %s31, 1
        %s399 = scalar_lea.sflag [#allocation6], %s398
        %s400 = sand.u32 %s65, 1
        %s401 = smul.addr %s400, 32
        %s402 = scalar_lea.vmem [#allocation5], %s401
        // Predicated region
        $region57: #{tpu_custom_call.1} parent=51 // pred_check
          %p403 = pneg %p78
        $region58: #{tpu_custom_call.1} parent=51 // pred_check_branch
          %405 = sbr.rel (%p403) target = $region60
        $region59: #{tpu_custom_call.1} parent=51 // pred_region
          %406 = dma.done %s399, 512
        $region60: #{tpu_custom_call.1} parent=51 // pred_fallthru
          _
        %s407 = sand.u32 %s31, 1
        %s408 = scalar_lea.sflag [#allocation6], %s407
        %s409 = sand.u32 %s91, 1
        %s410 = smul.addr %s409, 32
        %s411 = scalar_lea.vmem [#allocation7], %s410
        // Predicated region
        $region61: #{tpu_custom_call.1} parent=51 // pred_check
          %p412 = pneg %p104
        $region62: #{tpu_custom_call.1} parent=51 // pred_check_branch
          %414 = sbr.rel (%p412) target = $region64
        $region63: #{tpu_custom_call.1} parent=51 // pred_region
          %415 = dma.done %s408, 512
        $region64: #{tpu_custom_call.1} parent=51 // pred_fallthru
          _
        // Predicated region
        $region65: #{tpu_custom_call.1} parent=51 // pred_check
          %p416 = pneg %p125
        $region66: #{tpu_custom_call.1} parent=51 // pred_check_branch
          %418 = sbr.rel (%p416) target = $region68
        $region67: #{tpu_custom_call.1} parent=51 // pred_region
          %419 = dma.done [#allocation9], 256
        $region68: #{tpu_custom_call.1} parent=51 // pred_fallthru
          _
        // Predicated region
        $region69: #{tpu_custom_call.1} parent=51 // pred_check
          %p420 = pneg %p146
        $region70: #{tpu_custom_call.1} parent=51 // pred_check_branch
          %422 = sbr.rel (%p420) target = $region72
        $region71: #{tpu_custom_call.1} parent=51 // pred_region
          %423 = dma.done [#allocation9], 768
        $region72: #{tpu_custom_call.1} parent=51 // pred_fallthru
          _
        // Predicated region
        $region73: #{tpu_custom_call.1} parent=51 // pred_check
          %p424 = pneg %p167
        $region74: #{tpu_custom_call.1} parent=51 // pred_check_branch
          %426 = sbr.rel (%p424) target = $region76
        $region75: #{tpu_custom_call.1} parent=51 // pred_region
          %427 = dma.done [#allocation12], 768
        $region76: #{tpu_custom_call.1} parent=51 // pred_fallthru
          _
        // Predicated region
        $region77: #{tpu_custom_call.1} parent=51 // pred_check
          %p428 = pneg %p188
        $region78: #{tpu_custom_call.1} parent=51 // pred_check_branch
          %430 = sbr.rel (%p428) target = $region80
        $region79: #{tpu_custom_call.1} parent=51 // pred_region
          %431 = dma.done [#allocation12], 768
        $region80: #{tpu_custom_call.1} parent=51 // pred_fallthru
          _
        // Predicated region
        $region81: #{tpu_custom_call.1} parent=51 // pred_check
          %p432 = pneg %p209
        $region82: #{tpu_custom_call.1} parent=51 // pred_check_branch
          %434 = sbr.rel (%p432) target = $region84
        $region83: #{tpu_custom_call.1} parent=51 // pred_region
          %435 = dma.done [#allocation15], 2048
        $region84: #{tpu_custom_call.1} parent=51 // pred_fallthru
          _
        %s436 = sand.u32 %s39, 1
        %s437 = scalar_lea.sflag [#allocation3], %s436
        %s438 = sand.u32 %s39, 1
        %s439 = smul.addr %s438, 32
        %s440 = scalar_lea.vmem [#allocation2], %s439
        %p441 = pneg %p52
        %p442 = pneg %p49
        %s443 = sand.u32 %s31, 1
        %s444 = scalar_lea.sflag [#allocation6], %s443
        %s445 = sand.u32 %s65, 1
        %s446 = smul.addr %s445, 32
        %s447 = scalar_lea.vmem [#allocation5], %s446
        %p448 = pneg %p78
        %p449 = pneg %p75
        %s450 = sand.u32 %s31, 1
        %s451 = scalar_lea.sflag [#allocation6], %s450
        %s452 = sand.u32 %s91, 1
        %s453 = smul.addr %s452, 32
        %s454 = scalar_lea.vmem [#allocation7], %s453
        %p455 = pneg %p104
        %p456 = pneg %p101
        %p457 = pneg %p125
        %p458 = pneg %p122
        %p459 = pneg %p146
        %p460 = pneg %p143
        %p461 = pneg %p167
        %p462 = pneg %p164
        %p463 = pneg %p188
        %p464 = pneg %p185
        %p465 = pneg %p209
        %p466 = pneg %p206
        %p467 = pneg %p235
        %p468 = pneg %p232
        %s469 = sand.u32 %s222, 1
        %s470 = scalar_lea.sflag [#allocation4], %s469
        %s471 = sand.u32 %s222, 1
        %s472 = smul.addr %s471, 16
        %s473 = scalar_lea.vmem [#allocation16], %s472
        %v474 = vld [vmem:[%s393] sm:$0xff]
        %v475 = vld [vmem:[%s393 + $0x8] sm:$0xff]
        %s476 = scalar_lea.vmem %s393, 16 [#allocation2]
        %v477 = vld [vmem:[%s476] sm:$0xff]
        %v478 = vld [vmem:[%s476 + $0x8] sm:$0xff]
        %v479 = vld [vmem:[#allocation10] sm:$0xff]
        %v480 = vld [vmem:[#allocation10 + $0x8] sm:$0xff]
        %vm481 = vcmask 130048
        %v483 = vsel %vm481, %v479, 0
        %v486 = vsel %vm481, %v480, 0
        %488 = vmatprep.subr.mxu0 0.0
        %489 = vmatpush1.msra.mxu0 %v474
        %490 = vmatprep.subr.mxu0 0.0
        %491 = vmatpush1.msra.mxu0 %v475
        %492 = vmatprep.subr.mxu0 0.0
        %493 = vmatpush1.msra.mxu0 0.0
        %494 = vmatprep.subr.mxu0 0.0
        %495 = vmatpush1.msra.mxu0 0.0
        %496 = vmatprep.subr.mxu0 0.0
        %497 = vmatpush1.msra.mxu0 0.0
        %498 = vmatprep.subr.mxu0 0.0
        %499 = vmatpush1.msra.mxu0 0.0
        %500 = vmatprep.subr.mxu0 0.0
        %501 = vmatpush1.msra.mxu0 0.0
        %502 = vmatprep.subr.mxu0 0.0
        %503 = vmatpush1.msra.mxu0 0.0
        %504 = vmatprep.subr.mxu0 0.0
        %505 = vmatpush1.msra.mxu0 0.0
        %506 = vmatprep.subr.mxu0 0.0
        %507 = vmatpush1.msra.mxu0 0.0
        %508 = vmatprep.subr.mxu0 0.0
        %509 = vmatpush1.msra.mxu0 0.0
        %510 = vmatprep.subr.mxu0 0.0
        %511 = vmatpush1.msra.mxu0 0.0
        %512 = vmatprep.subr.mxu0 0.0
        %513 = vmatpush1.msra.mxu0 0.0
        %514 = vmatprep.subr.mxu0 0.0
        %515 = vmatpush1.msra.mxu0 0.0
        %516 = vmatprep.subr.mxu0 0.0
        %517 = vmatpush1.msra.mxu0 0.0
        %518 = vmatprep.subr.mxu0 0.0
        %519 = vmatpush1.msra.mxu0 0.0
        %520 = vmatprep.subr.mxu0 0.0
        %521 = vmatpush1.msra.mxu0 0.0
        %522 = vmatprep.subr.mxu0 0.0
        %523 = vmatpush1.msra.mxu0 0.0
        %524 = vmatprep.subr.mxu0 0.0
        %525 = vmatpush1.msra.mxu0 0.0
        %526 = vmatprep.subr.mxu0 0.0
        %527 = vmatpush1.msra.mxu0 0.0
        %528 = vmatprep.subr.mxu0 0.0
        %529 = vmatpush1.msra.mxu0 0.0
        %530 = vmatprep.subr.mxu0 0.0
        %531 = vmatpush1.msra.mxu0 0.0
        %532 = vmatprep.subr.mxu0 0.0
        %533 = vmatpush1.msra.mxu0 0.0
        %534 = vmatprep.subr.mxu0 0.0
        %535 = vmatpush1.msra.mxu0 0.0
        %536 = vmatprep.subr.mxu0 0.0
        %537 = vmatpush1.msra.mxu0 0.0
        %538 = vmatprep.subr.mxu0 0.0
        %539 = vmatpush1.msra.mxu0 0.0
        %540 = vmatprep.subr.mxu0 0.0
        %541 = vmatpush1.msra.mxu0 0.0
        %542 = vmatprep.subr.mxu0 0.0
        %543 = vmatpush1.msra.mxu0 0.0
        %544 = vmatprep.subr.mxu0 0.0
        %545 = vmatpush1.msra.mxu0 0.0
        %546 = vmatprep.subr.mxu0 0.0
        %547 = vmatpush1.msra.mxu0 0.0
        %548 = vmatprep.subr.mxu0 0.0
        %549 = vmatpush1.msra.mxu0 0.0
        %550 = vmatprep.subr.mxu0 0.0
        %551 = vmatpush1.msra.mxu0 0.0
        %552 = vmatprep.mubr.f32.mxu0 0.0
        %553 = vmatmul.mubr.f32.gmra.mrb[0].mxu0 %v483
        %v554 = vpop.f32.mrb[0].mxu0
        %v555 = vadd.f32 0.0, %v554
        %v556 = vpop.f32.mrb[0].mxu0
        %557 = vmatprep.mubr.f32.mxu0 0.0
        %558 = vmatmul.mubr.f32.gmra.mrb[0].mxu0 %v486
        %v559 = vpop.f32.mrb[0].mxu0
        %v560 = vadd.f32 0.0, %v559
        %v561 = vpop.f32.mrb[0].mxu0
        %562 = vdwg.mxu0
        %s563 = scalar_lea.vmem [#allocation10], 16
        %v564 = vld [vmem:[%s563] sm:$0xff]
        %v565 = vld [vmem:[%s563 + $0x8] sm:$0xff]
        %v567 = vsel %vm481, %v564, 0
        %v570 = vsel %vm481, %v565, 0
        %572 = vmatprep.subr.mxu0 0.0
        %573 = vmatpush1.msra.mxu0 %v477
        %574 = vmatprep.subr.mxu0 0.0
        %575 = vmatpush1.msra.mxu0 %v478
        %576 = vmatprep.subr.mxu0 0.0
        %577 = vmatpush1.msra.mxu0 0.0
        %578 = vmatprep.subr.mxu0 0.0
        %579 = vmatpush1.msra.mxu0 0.0
        %580 = vmatprep.subr.mxu0 0.0
        %581 = vmatpush1.msra.mxu0 0.0
        %582 = vmatprep.subr.mxu0 0.0
        %583 = vmatpush1.msra.mxu0 0.0
        %584 = vmatprep.subr.mxu0 0.0
        %585 = vmatpush1.msra.mxu0 0.0
        %586 = vmatprep.subr.mxu0 0.0
        %587 = vmatpush1.msra.mxu0 0.0
        %588 = vmatprep.subr.mxu0 0.0
        %589 = vmatpush1.msra.mxu0 0.0
        %590 = vmatprep.subr.mxu0 0.0
        %591 = vmatpush1.msra.mxu0 0.0
        %592 = vmatprep.subr.mxu0 0.0
        %593 = vmatpush1.msra.mxu0 0.0
        %594 = vmatprep.subr.mxu0 0.0
        %595 = vmatpush1.msra.mxu0 0.0
        %596 = vmatprep.subr.mxu0 0.0
        %597 = vmatpush1.msra.mxu0 0.0
        %598 = vmatprep.subr.mxu0 0.0
        %599 = vmatpush1.msra.mxu0 0.0
        %600 = vmatprep.subr.mxu0 0.0
        %601 = vmatpush1.msra.mxu0 0.0
        %602 = vmatprep.subr.mxu0 0.0
        %603 = vmatpush1.msra.mxu0 0.0
        %604 = vmatprep.subr.mxu0 0.0
        %605 = vmatpush1.msra.mxu0 0.0
        %606 = vmatprep.subr.mxu0 0.0
        %607 = vmatpush1.msra.mxu0 0.0
        %608 = vmatprep.subr.mxu0 0.0
        %609 = vmatpush1.msra.mxu0 0.0
        %610 = vmatprep.subr.mxu0 0.0
        %611 = vmatpush1.msra.mxu0 0.0
        %612 = vmatprep.subr.mxu0 0.0
        %613 = vmatpush1.msra.mxu0 0.0
        %614 = vmatprep.subr.mxu0 0.0
        %615 = vmatpush1.msra.mxu0 0.0
        %616 = vmatprep.subr.mxu0 0.0
        %617 = vmatpush1.msra.mxu0 0.0
        %618 = vmatprep.subr.mxu0 0.0
        %619 = vmatpush1.msra.mxu0 0.0
        %620 = vmatprep.subr.mxu0 0.0
        %621 = vmatpush1.msra.mxu0 0.0
        %622 = vmatprep.subr.mxu0 0.0
        %623 = vmatpush1.msra.mxu0 0.0
        %624 = vmatprep.subr.mxu0 0.0
        %625 = vmatpush1.msra.mxu0 0.0
        %626 = vmatprep.subr.mxu0 0.0
        %627 = vmatpush1.msra.mxu0 0.0
        %628 = vmatprep.subr.mxu0 0.0
        %629 = vmatpush1.msra.mxu0 0.0
        %630 = vmatprep.subr.mxu0 0.0
        %631 = vmatpush1.msra.mxu0 0.0
        %632 = vmatprep.subr.mxu0 0.0
        %633 = vmatpush1.msra.mxu0 0.0
        %634 = vmatprep.subr.mxu0 0.0
        %635 = vmatpush1.msra.mxu0 0.0
        %636 = vmatprep.mubr.f32.mxu0 0.0
        %637 = vmatmul.mubr.f32.gmra.mrb[0].mxu0 %v567
        %v638 = vpop.f32.mrb[0].mxu0
        %v639 = vadd.f32 0.0, %v638
        %v640 = vpop.f32.mrb[0].mxu0
        %641 = vmatprep.mubr.f32.mxu0 0.0
        %642 = vmatmul.mubr.f32.gmra.mrb[0].mxu0 %v570
        %v643 = vpop.f32.mrb[0].mxu0
        %v644 = vadd.f32 0.0, %v643
        %v645 = vpop.f32.mrb[0].mxu0
        %646 = vdwg.mxu0
        %s647 = scalar_lea.vmem [#allocation10], 32
        %v648 = vld [vmem:[%s647] sm:$0xff]
        %v649 = vld [vmem:[%s647 + $0x8] sm:$0xff]
        %v650 = vadd.f32 %v474, %v477
        %v651 = vadd.f32 %v475, %v478
        %v653 = vsel %vm481, %v648, 0
        %v656 = vsel %vm481, %v649, 0
        %658 = vmatprep.subr.mxu0 0.0
        %659 = vmatpush1.msra.mxu0 %v650
        %660 = vmatprep.subr.mxu0 0.0
        %661 = vmatpush1.msra.mxu0 %v651
        %662 = vmatprep.subr.mxu0 0.0
        %663 = vmatpush1.msra.mxu0 0.0
        %664 = vmatprep.subr.mxu0 0.0
        %665 = vmatpush1.msra.mxu0 0.0
        %666 = vmatprep.subr.mxu0 0.0
        %667 = vmatpush1.msra.mxu0 0.0
        %668 = vmatprep.subr.mxu0 0.0
        %669 = vmatpush1.msra.mxu0 0.0
        %670 = vmatprep.subr.mxu0 0.0
        %671 = vmatpush1.msra.mxu0 0.0
        %672 = vmatprep.subr.mxu0 0.0
        %673 = vmatpush1.msra.mxu0 0.0
        %674 = vmatprep.subr.mxu0 0.0
        %675 = vmatpush1.msra.mxu0 0.0
        %676 = vmatprep.subr.mxu0 0.0
        %677 = vmatpush1.msra.mxu0 0.0
        %678 = vmatprep.subr.mxu0 0.0
        %679 = vmatpush1.msra.mxu0 0.0
        %680 = vmatprep.subr.mxu0 0.0
        %681 = vmatpush1.msra.mxu0 0.0
        %682 = vmatprep.subr.mxu0 0.0
        %683 = vmatpush1.msra.mxu0 0.0
        %684 = vmatprep.subr.mxu0 0.0
        %685 = vmatpush1.msra.mxu0 0.0
        %686 = vmatprep.subr.mxu0 0.0
        %687 = vmatpush1.msra.mxu0 0.0
        %688 = vmatprep.subr.mxu0 0.0
        %689 = vmatpush1.msra.mxu0 0.0
        %690 = vmatprep.subr.mxu0 0.0
        %691 = vmatpush1.msra.mxu0 0.0
        %692 = vmatprep.subr.mxu0 0.0
        %693 = vmatpush1.msra.mxu0 0.0
        %694 = vmatprep.subr.mxu0 0.0
        %695 = vmatpush1.msra.mxu0 0.0
        %696 = vmatprep.subr.mxu0 0.0
        %697 = vmatpush1.msra.mxu0 0.0
        %698 = vmatprep.subr.mxu0 0.0
        %699 = vmatpush1.msra.mxu0 0.0
        %700 = vmatprep.subr.mxu0 0.0
        %701 = vmatpush1.msra.mxu0 0.0
        %702 = vmatprep.subr.mxu0 0.0
        %703 = vmatpush1.msra.mxu0 0.0
        %704 = vmatprep.subr.mxu0 0.0
        %705 = vmatpush1.msra.mxu0 0.0
        %706 = vmatprep.subr.mxu0 0.0
        %707 = vmatpush1.msra.mxu0 0.0
        %708 = vmatprep.subr.mxu0 0.0
        %709 = vmatpush1.msra.mxu0 0.0
        %710 = vmatprep.subr.mxu0 0.0
        %711 = vmatpush1.msra.mxu0 0.0
        %712 = vmatprep.subr.mxu0 0.0
        %713 = vmatpush1.msra.mxu0 0.0
        %714 = vmatprep.subr.mxu0 0.0
        %715 = vmatpush1.msra.mxu0 0.0
        %716 = vmatprep.subr.mxu0 0.0
        %717 = vmatpush1.msra.mxu0 0.0
        %718 = vmatprep.subr.mxu0 0.0
        %719 = vmatpush1.msra.mxu0 0.0
        %720 = vmatprep.subr.mxu0 0.0
        %721 = vmatpush1.msra.mxu0 0.0
        %722 = vmatprep.mubr.f32.mxu0 0.0
        %723 = vmatmul.mubr.f32.gmra.mrb[0].mxu0 %v653
        %v724 = vpop.f32.mrb[0].mxu0
        %v725 = vadd.f32 0.0, %v724
        %v726 = vpop.f32.mrb[0].mxu0
        %727 = vmatprep.mubr.f32.mxu0 0.0
        %728 = vmatmul.mubr.f32.gmra.mrb[0].mxu0 %v656
        %v729 = vpop.f32.mrb[0].mxu0
        %v730 = vadd.f32 0.0, %v729
        %v731 = vpop.f32.mrb[0].mxu0
        %732 = vdwg.mxu0
        %v733 = vsub.f32 %v555, %v639
        %v734 = vsub.f32 %v560, %v644
        %v735 = vsub.f32 %v725, %v555
        %v736 = vsub.f32 %v730, %v560
        %v737 = vsub.f32 %v735, %v639
        %v738 = vsub.f32 %v736, %v644
        %v739 = vld [vmem:[#allocation11] sm:$0xff]
        %v740 = vld [vmem:[#allocation11 + $0x8] sm:$0xff]
        %v742 = vsel %vm481, %v733, 0
        %v745 = vsel %vm481, %v734, 0
        %747 = vmatprep.subr.mxu0 0.0
        %748 = vmatpush1.msra.mxu0 %v739
        %749 = vmatprep.subr.mxu0 0.0
        %750 = vmatpush1.msra.mxu0 %v740
        %751 = vmatprep.subr.mxu0 0.0
        %752 = vmatpush1.msra.mxu0 0.0
        %753 = vmatprep.subr.mxu0 0.0
        %754 = vmatpush1.msra.mxu0 0.0
        %755 = vmatprep.subr.mxu0 0.0
        %756 = vmatpush1.msra.mxu0 0.0
        %757 = vmatprep.subr.mxu0 0.0
        %758 = vmatpush1.msra.mxu0 0.0
        %759 = vmatprep.subr.mxu0 0.0
        %760 = vmatpush1.msra.mxu0 0.0
        %761 = vmatprep.subr.mxu0 0.0
        %762 = vmatpush1.msra.mxu0 0.0
        %763 = vmatprep.subr.mxu0 0.0
        %764 = vmatpush1.msra.mxu0 0.0
        %765 = vmatprep.subr.mxu0 0.0
        %766 = vmatpush1.msra.mxu0 0.0
        %767 = vmatprep.subr.mxu0 0.0
        %768 = vmatpush1.msra.mxu0 0.0
        %769 = vmatprep.subr.mxu0 0.0
        %770 = vmatpush1.msra.mxu0 0.0
        %771 = vmatprep.subr.mxu0 0.0
        %772 = vmatpush1.msra.mxu0 0.0
        %773 = vmatprep.subr.mxu0 0.0
        %774 = vmatpush1.msra.mxu0 0.0
        %775 = vmatprep.subr.mxu0 0.0
        %776 = vmatpush1.msra.mxu0 0.0
        %777 = vmatprep.subr.mxu0 0.0
        %778 = vmatpush1.msra.mxu0 0.0
        %779 = vmatprep.subr.mxu0 0.0
        %780 = vmatpush1.msra.mxu0 0.0
        %781 = vmatprep.subr.mxu0 0.0
        %782 = vmatpush1.msra.mxu0 0.0
        %783 = vmatprep.subr.mxu0 0.0
        %784 = vmatpush1.msra.mxu0 0.0
        %785 = vmatprep.subr.mxu0 0.0
        %786 = vmatpush1.msra.mxu0 0.0
        %787 = vmatprep.subr.mxu0 0.0
        %788 = vmatpush1.msra.mxu0 0.0
        %789 = vmatprep.subr.mxu0 0.0
        %790 = vmatpush1.msra.mxu0 0.0
        %791 = vmatprep.subr.mxu0 0.0
        %792 = vmatpush1.msra.mxu0 0.0
        %793 = vmatprep.subr.mxu0 0.0
        %794 = vmatpush1.msra.mxu0 0.0
        %795 = vmatprep.subr.mxu0 0.0
        %796 = vmatpush1.msra.mxu0 0.0
        %797 = vmatprep.subr.mxu0 0.0
        %798 = vmatpush1.msra.mxu0 0.0
        %799 = vmatprep.subr.mxu0 0.0
        %800 = vmatpush1.msra.mxu0 0.0
        %801 = vmatprep.subr.mxu0 0.0
        %802 = vmatpush1.msra.mxu0 0.0
        %803 = vmatprep.subr.mxu0 0.0
        %804 = vmatpush1.msra.mxu0 0.0
        %805 = vmatprep.subr.mxu0 0.0
        %806 = vmatpush1.msra.mxu0 0.0
        %807 = vmatprep.subr.mxu0 0.0
        %808 = vmatpush1.msra.mxu0 0.0
        %809 = vmatprep.subr.mxu0 0.0
        %810 = vmatpush1.msra.mxu0 0.0
        %811 = vmatprep.mubr.f32.mxu0 0.0
        %812 = vmatmul.mubr.f32.gmra.mrb[0].mxu0 %v742
        %v813 = vpop.f32.mrb[0].mxu0
        %v814 = vadd.f32 0.0, %v813
        %v815 = vpop.f32.mrb[0].mxu0
        %816 = vmatprep.mubr.f32.mxu0 0.0
        %817 = vmatmul.mubr.f32.gmra.mrb[0].mxu0 %v745
        %v818 = vpop.f32.mrb[0].mxu0
        %v819 = vadd.f32 0.0, %v818
        %v820 = vpop.f32.mrb[0].mxu0
        %821 = vdwg.mxu0
        %s822 = scalar_lea.vmem [#allocation11], 16
        %v823 = vld [vmem:[%s822] sm:$0xff]
        %v824 = vld [vmem:[%s822 + $0x8] sm:$0xff]
        %v826 = vsel %vm481, %v737, 0
        %v829 = vsel %vm481, %v738, 0
        %831 = vmatprep.subr.mxu0 0.0
        %832 = vmatpush1.msra.mxu0 %v823
        %833 = vmatprep.subr.mxu0 0.0
        %834 = vmatpush1.msra.mxu0 %v824
        %835 = vmatprep.subr.mxu0 0.0
        %836 = vmatpush1.msra.mxu0 0.0
        %837 = vmatprep.subr.mxu0 0.0
        %838 = vmatpush1.msra.mxu0 0.0
        %839 = vmatprep.subr.mxu0 0.0
        %840 = vmatpush1.msra.mxu0 0.0
        %841 = vmatprep.subr.mxu0 0.0
        %842 = vmatpush1.msra.mxu0 0.0
        %843 = vmatprep.subr.mxu0 0.0
        %844 = vmatpush1.msra.mxu0 0.0
        %845 = vmatprep.subr.mxu0 0.0
        %846 = vmatpush1.msra.mxu0 0.0
        %847 = vmatprep.subr.mxu0 0.0
        %848 = vmatpush1.msra.mxu0 0.0
        %849 = vmatprep.subr.mxu0 0.0
        %850 = vmatpush1.msra.mxu0 0.0
        %851 = vmatprep.subr.mxu0 0.0
        %852 = vmatpush1.msra.mxu0 0.0
        %853 = vmatprep.subr.mxu0 0.0
        %854 = vmatpush1.msra.mxu0 0.0
        %855 = vmatprep.subr.mxu0 0.0
        %856 = vmatpush1.msra.mxu0 0.0
        %857 = vmatprep.subr.mxu0 0.0
        %858 = vmatpush1.msra.mxu0 0.0
        %859 = vmatprep.subr.mxu0 0.0
        %860 = vmatpush1.msra.mxu0 0.0
        %861 = vmatprep.subr.mxu0 0.0
        %862 = vmatpush1.msra.mxu0 0.0
        %863 = vmatprep.subr.mxu0 0.0
        %864 = vmatpush1.msra.mxu0 0.0
        %865 = vmatprep.subr.mxu0 0.0
        %866 = vmatpush1.msra.mxu0 0.0
        %867 = vmatprep.subr.mxu0 0.0
        %868 = vmatpush1.msra.mxu0 0.0
        %869 = vmatprep.subr.mxu0 0.0
        %870 = vmatpush1.msra.mxu0 0.0
        %871 = vmatprep.subr.mxu0 0.0
        %872 = vmatpush1.msra.mxu0 0.0
        %873 = vmatprep.subr.mxu0 0.0
        %874 = vmatpush1.msra.mxu0 0.0
        %875 = vmatprep.subr.mxu0 0.0
        %876 = vmatpush1.msra.mxu0 0.0
        %877 = vmatprep.subr.mxu0 0.0
        %878 = vmatpush1.msra.mxu0 0.0
        %879 = vmatprep.subr.mxu0 0.0
        %880 = vmatpush1.msra.mxu0 0.0
        %881 = vmatprep.subr.mxu0 0.0
        %882 = vmatpush1.msra.mxu0 0.0
        %883 = vmatprep.subr.mxu0 0.0
        %884 = vmatpush1.msra.mxu0 0.0
        %885 = vmatprep.subr.mxu0 0.0
        %886 = vmatpush1.msra.mxu0 0.0
        %887 = vmatprep.subr.mxu0 0.0
        %888 = vmatpush1.msra.mxu0 0.0
        %889 = vmatprep.subr.mxu0 0.0
        %890 = vmatpush1.msra.mxu0 0.0
        %891 = vmatprep.subr.mxu0 0.0
        %892 = vmatpush1.msra.mxu0 0.0
        %893 = vmatprep.subr.mxu0 0.0
        %894 = vmatpush1.msra.mxu0 0.0
        %895 = vmatprep.mubr.f32.mxu0 0.0
        %896 = vmatmul.mubr.f32.gmra.mrb[0].mxu0 %v826
        %v897 = vpop.f32.mrb[0].mxu0
        %v898 = vadd.f32 0.0, %v897
        %v899 = vpop.f32.mrb[0].mxu0
        %900 = vmatprep.mubr.f32.mxu0 0.0
        %901 = vmatmul.mubr.f32.gmra.mrb[0].mxu0 %v829
        %v902 = vpop.f32.mrb[0].mxu0
        %v903 = vadd.f32 0.0, %v902
        %v904 = vpop.f32.mrb[0].mxu0
        %905 = vdwg.mxu0
        %v906 = vadd.f32 %v733, %v737
        %v907 = vadd.f32 %v734, %v738
        %s908 = scalar_lea.vmem [#allocation11], 32
        %v909 = vld [vmem:[%s908] sm:$0xff]
        %v910 = vld [vmem:[%s908 + $0x8] sm:$0xff]
        %v912 = vsel %vm481, %v906, 0
        %v915 = vsel %vm481, %v907, 0
        %917 = vmatprep.subr.mxu0 0.0
        %918 = vmatpush1.msra.mxu0 %v909
        %919 = vmatprep.subr.mxu0 0.0
        %920 = vmatpush1.msra.mxu0 %v910
        %921 = vmatprep.subr.mxu0 0.0
        %922 = vmatpush1.msra.mxu0 0.0
        %923 = vmatprep.subr.mxu0 0.0
        %924 = vmatpush1.msra.mxu0 0.0
        %925 = vmatprep.subr.mxu0 0.0
        %926 = vmatpush1.msra.mxu0 0.0
        %927 = vmatprep.subr.mxu0 0.0
        %928 = vmatpush1.msra.mxu0 0.0
        %929 = vmatprep.subr.mxu0 0.0
        %930 = vmatpush1.msra.mxu0 0.0
        %931 = vmatprep.subr.mxu0 0.0
        %932 = vmatpush1.msra.mxu0 0.0
        %933 = vmatprep.subr.mxu0 0.0
        %934 = vmatpush1.msra.mxu0 0.0
        %935 = vmatprep.subr.mxu0 0.0
        %936 = vmatpush1.msra.mxu0 0.0
        %937 = vmatprep.subr.mxu0 0.0
        %938 = vmatpush1.msra.mxu0 0.0
        %939 = vmatprep.subr.mxu0 0.0
        %940 = vmatpush1.msra.mxu0 0.0
        %941 = vmatprep.subr.mxu0 0.0
        %942 = vmatpush1.msra.mxu0 0.0
        %943 = vmatprep.subr.mxu0 0.0
        %944 = vmatpush1.msra.mxu0 0.0
        %945 = vmatprep.subr.mxu0 0.0
        %946 = vmatpush1.msra.mxu0 0.0
        %947 = vmatprep.subr.mxu0 0.0
        %948 = vmatpush1.msra.mxu0 0.0
        %949 = vmatprep.subr.mxu0 0.0
        %950 = vmatpush1.msra.mxu0 0.0
        %951 = vmatprep.subr.mxu0 0.0
        %952 = vmatpush1.msra.mxu0 0.0
        %953 = vmatprep.subr.mxu0 0.0
        %954 = vmatpush1.msra.mxu0 0.0
        %955 = vmatprep.subr.mxu0 0.0
        %956 = vmatpush1.msra.mxu0 0.0
        %957 = vmatprep.subr.mxu0 0.0
        %958 = vmatpush1.msra.mxu0 0.0
        %959 = vmatprep.subr.mxu0 0.0
        %960 = vmatpush1.msra.mxu0 0.0
        %961 = vmatprep.subr.mxu0 0.0
        %962 = vmatpush1.msra.mxu0 0.0
        %963 = vmatprep.subr.mxu0 0.0
        %964 = vmatpush1.msra.mxu0 0.0
        %965 = vmatprep.subr.mxu0 0.0
        %966 = vmatpush1.msra.mxu0 0.0
        %967 = vmatprep.subr.mxu0 0.0
        %968 = vmatpush1.msra.mxu0 0.0
        %969 = vmatprep.subr.mxu0 0.0
        %970 = vmatpush1.msra.mxu0 0.0
        %971 = vmatprep.subr.mxu0 0.0
        %972 = vmatpush1.msra.mxu0 0.0
        %973 = vmatprep.subr.mxu0 0.0
        %974 = vmatpush1.msra.mxu0 0.0
        %975 = vmatprep.subr.mxu0 0.0
        %976 = vmatpush1.msra.mxu0 0.0
        %977 = vmatprep.subr.mxu0 0.0
        %978 = vmatpush1.msra.mxu0 0.0
        %979 = vmatprep.subr.mxu0 0.0
        %980 = vmatpush1.msra.mxu0 0.0
        %981 = vmatprep.mubr.f32.mxu0 0.0
        %982 = vmatmul.mubr.f32.gmra.mrb[0].mxu0 %v912
        %v983 = vpop.f32.mrb[0].mxu0
        %v984 = vadd.f32 0.0, %v983
        %v985 = vpop.f32.mrb[0].mxu0
        %986 = vmatprep.mubr.f32.mxu0 0.0
        %987 = vmatmul.mubr.f32.gmra.mrb[0].mxu0 %v915
        %v988 = vpop.f32.mrb[0].mxu0
        %v989 = vadd.f32 0.0, %v988
        %v990 = vpop.f32.mrb[0].mxu0
        %991 = vdwg.mxu0
        %v992 = vsub.f32 %v814, %v898
        %v993 = vsub.f32 %v819, %v903
        %v994 = vsub.f32 %v984, %v814
        %v995 = vsub.f32 %v989, %v819
        %v996 = vsub.f32 %v994, %v898
        %v997 = vsub.f32 %v995, %v903
        %v998 = vld [vmem:[#allocation8] sm:$0xff]
        %v999 = vld [vmem:[#allocation8 + $0x8] sm:$0xff]
        %v1000 = vld [vmem:[%s402] sm:$0xff]
        %v1001 = vld [vmem:[%s402 + $0x8] sm:$0xff]
        %v1002 = vld [vmem:[%s411] sm:$0xff]
        %v1003 = vld [vmem:[%s411 + $0x8] sm:$0xff]
        %v1004 = vsub.f32 %v992, %v1002
        %v1005 = vsub.f32 %v993, %v1003
        %v1006 = vmul.f32 %v998, %v1004
        %v1007 = vmul.f32 %v999, %v1005
        %v1008 = vsub.f32 %v1000, %v1006
        %v1009 = vsub.f32 %v1001, %v1007
        %v1010 = vsub.f32 %v1008, %v992
        %v1011 = vsub.f32 %v1009, %v993
        %s1012 = scalar_lea.vmem %s402, 16 [#allocation5]
        %v1013 = vld [vmem:[%s1012] sm:$0xff]
        %v1014 = vld [vmem:[%s1012 + $0x8] sm:$0xff]
        %s1015 = scalar_lea.vmem %s411, 16 [#allocation7]
        %v1016 = vld [vmem:[%s1015] sm:$0xff]
        %v1017 = vld [vmem:[%s1015 + $0x8] sm:$0xff]
        %v1018 = vsub.f32 %v996, %v1016
        %v1019 = vsub.f32 %v997, %v1017
        %v1020 = vmul.f32 %v998, %v1018
        %v1021 = vmul.f32 %v999, %v1019
        %v1022 = vsub.f32 %v1013, %v1020
        %v1023 = vsub.f32 %v1014, %v1021
        %v1024 = vsub.f32 %v1022, %v996
        %v1025 = vsub.f32 %v1023, %v997
        %v1026 = vld [vmem:[#allocation13] sm:$0xff]
        %v1027 = vld [vmem:[#allocation13 + $0x8] sm:$0xff]
        %v1029 = vsel %vm481, %v1026, 0
        %v1032 = vsel %vm481, %v1027, 0
        %1034 = vmatprep.subr.mxu0 0.0
        %1035 = vmatpush1.msra.mxu0 %v1010
        %1036 = vmatprep.subr.mxu0 0.0
        %1037 = vmatpush1.msra.mxu0 %v1011
        %1038 = vmatprep.subr.mxu0 0.0
        %1039 = vmatpush1.msra.mxu0 0.0
        %1040 = vmatprep.subr.mxu0 0.0
        %1041 = vmatpush1.msra.mxu0 0.0
        %1042 = vmatprep.subr.mxu0 0.0
        %1043 = vmatpush1.msra.mxu0 0.0
        %1044 = vmatprep.subr.mxu0 0.0
        %1045 = vmatpush1.msra.mxu0 0.0
        %1046 = vmatprep.subr.mxu0 0.0
        %1047 = vmatpush1.msra.mxu0 0.0
        %1048 = vmatprep.subr.mxu0 0.0
        %1049 = vmatpush1.msra.mxu0 0.0
        %1050 = vmatprep.subr.mxu0 0.0
        %1051 = vmatpush1.msra.mxu0 0.0
        %1052 = vmatprep.subr.mxu0 0.0
        %1053 = vmatpush1.msra.mxu0 0.0
        %1054 = vmatprep.subr.mxu0 0.0
        %1055 = vmatpush1.msra.mxu0 0.0
        %1056 = vmatprep.subr.mxu0 0.0
        %1057 = vmatpush1.msra.mxu0 0.0
        %1058 = vmatprep.subr.mxu0 0.0
        %1059 = vmatpush1.msra.mxu0 0.0
        %1060 = vmatprep.subr.mxu0 0.0
        %1061 = vmatpush1.msra.mxu0 0.0
        %1062 = vmatprep.subr.mxu0 0.0
        %1063 = vmatpush1.msra.mxu0 0.0
        %1064 = vmatprep.subr.mxu0 0.0
        %1065 = vmatpush1.msra.mxu0 0.0
        %1066 = vmatprep.subr.mxu0 0.0
        %1067 = vmatpush1.msra.mxu0 0.0
        %1068 = vmatprep.subr.mxu0 0.0
        %1069 = vmatpush1.msra.mxu0 0.0
        %1070 = vmatprep.subr.mxu0 0.0
        %1071 = vmatpush1.msra.mxu0 0.0
        %1072 = vmatprep.subr.mxu0 0.0
        %1073 = vmatpush1.msra.mxu0 0.0
        %1074 = vmatprep.subr.mxu0 0.0
        %1075 = vmatpush1.msra.mxu0 0.0
        %1076 = vmatprep.subr.mxu0 0.0
        %1077 = vmatpush1.msra.mxu0 0.0
        %1078 = vmatprep.subr.mxu0 0.0
        %1079 = vmatpush1.msra.mxu0 0.0
        %1080 = vmatprep.subr.mxu0 0.0
        %1081 = vmatpush1.msra.mxu0 0.0
        %1082 = vmatprep.subr.mxu0 0.0
        %1083 = vmatpush1.msra.mxu0 0.0
        %1084 = vmatprep.subr.mxu0 0.0
        %1085 = vmatpush1.msra.mxu0 0.0
        %1086 = vmatprep.subr.mxu0 0.0
        %1087 = vmatpush1.msra.mxu0 0.0
        %1088 = vmatprep.subr.mxu0 0.0
        %1089 = vmatpush1.msra.mxu0 0.0
        %1090 = vmatprep.subr.mxu0 0.0
        %1091 = vmatpush1.msra.mxu0 0.0
        %1092 = vmatprep.subr.mxu0 0.0
        %1093 = vmatpush1.msra.mxu0 0.0
        %1094 = vmatprep.subr.mxu0 0.0
        %1095 = vmatpush1.msra.mxu0 0.0
        %1096 = vmatprep.subr.mxu0 0.0
        %1097 = vmatpush1.msra.mxu0 0.0
        %1098 = vmatprep.mubr.f32.mxu0 0.0
        %1099 = vmatmul.mubr.f32.gmra.mrb[0].mxu0 %v1029
        %v1100 = vpop.f32.mrb[0].mxu0
        %v1101 = vadd.f32 0.0, %v1100
        %v1102 = vpop.f32.mrb[0].mxu0
        %1103 = vmatprep.mubr.f32.mxu0 0.0
        %1104 = vmatmul.mubr.f32.gmra.mrb[0].mxu0 %v1032
        %v1105 = vpop.f32.mrb[0].mxu0
        %v1106 = vadd.f32 0.0, %v1105
        %v1107 = vpop.f32.mrb[0].mxu0
        %1108 = vdwg.mxu0
        %s1109 = scalar_lea.vmem [#allocation13], 16
        %v1110 = vld [vmem:[%s1109] sm:$0xff]
        %v1111 = vld [vmem:[%s1109 + $0x8] sm:$0xff]
        %v1113 = vsel %vm481, %v1110, 0
        %v1116 = vsel %vm481, %v1111, 0
        %1118 = vmatprep.subr.mxu0 0.0
        %1119 = vmatpush1.msra.mxu0 %v1024
        %1120 = vmatprep.subr.mxu0 0.0
        %1121 = vmatpush1.msra.mxu0 %v1025
        %1122 = vmatprep.subr.mxu0 0.0
        %1123 = vmatpush1.msra.mxu0 0.0
        %1124 = vmatprep.subr.mxu0 0.0
        %1125 = vmatpush1.msra.mxu0 0.0
        %1126 = vmatprep.subr.mxu0 0.0
        %1127 = vmatpush1.msra.mxu0 0.0
        %1128 = vmatprep.subr.mxu0 0.0
        %1129 = vmatpush1.msra.mxu0 0.0
        %1130 = vmatprep.subr.mxu0 0.0
        %1131 = vmatpush1.msra.mxu0 0.0
        %1132 = vmatprep.subr.mxu0 0.0
        %1133 = vmatpush1.msra.mxu0 0.0
        %1134 = vmatprep.subr.mxu0 0.0
        %1135 = vmatpush1.msra.mxu0 0.0
        %1136 = vmatprep.subr.mxu0 0.0
        %1137 = vmatpush1.msra.mxu0 0.0
        %1138 = vmatprep.subr.mxu0 0.0
        %1139 = vmatpush1.msra.mxu0 0.0
        %1140 = vmatprep.subr.mxu0 0.0
        %1141 = vmatpush1.msra.mxu0 0.0
        %1142 = vmatprep.subr.mxu0 0.0
        %1143 = vmatpush1.msra.mxu0 0.0
        %1144 = vmatprep.subr.mxu0 0.0
        %1145 = vmatpush1.msra.mxu0 0.0
        %1146 = vmatprep.subr.mxu0 0.0
        %1147 = vmatpush1.msra.mxu0 0.0
        %1148 = vmatprep.subr.mxu0 0.0
        %1149 = vmatpush1.msra.mxu0 0.0
        %1150 = vmatprep.subr.mxu0 0.0
        %1151 = vmatpush1.msra.mxu0 0.0
        %1152 = vmatprep.subr.mxu0 0.0
        %1153 = vmatpush1.msra.mxu0 0.0
        %1154 = vmatprep.subr.mxu0 0.0
        %1155 = vmatpush1.msra.mxu0 0.0
        %1156 = vmatprep.subr.mxu0 0.0
        %1157 = vmatpush1.msra.mxu0 0.0
        %1158 = vmatprep.subr.mxu0 0.0
        %1159 = vmatpush1.msra.mxu0 0.0
        %1160 = vmatprep.subr.mxu0 0.0
        %1161 = vmatpush1.msra.mxu0 0.0
        %1162 = vmatprep.subr.mxu0 0.0
        %1163 = vmatpush1.msra.mxu0 0.0
        %1164 = vmatprep.subr.mxu0 0.0
        %1165 = vmatpush1.msra.mxu0 0.0
        %1166 = vmatprep.subr.mxu0 0.0
        %1167 = vmatpush1.msra.mxu0 0.0
        %1168 = vmatprep.subr.mxu0 0.0
        %1169 = vmatpush1.msra.mxu0 0.0
        %1170 = vmatprep.subr.mxu0 0.0
        %1171 = vmatpush1.msra.mxu0 0.0
        %1172 = vmatprep.subr.mxu0 0.0
        %1173 = vmatpush1.msra.mxu0 0.0
        %1174 = vmatprep.subr.mxu0 0.0
        %1175 = vmatpush1.msra.mxu0 0.0
        %1176 = vmatprep.subr.mxu0 0.0
        %1177 = vmatpush1.msra.mxu0 0.0
        %1178 = vmatprep.subr.mxu0 0.0
        %1179 = vmatpush1.msra.mxu0 0.0
        %1180 = vmatprep.subr.mxu0 0.0
        %1181 = vmatpush1.msra.mxu0 0.0
        %1182 = vmatprep.mubr.f32.mxu0 0.0
        %1183 = vmatmul.mubr.f32.gmra.mrb[0].mxu0 %v1113
        %v1184 = vpop.f32.mrb[0].mxu0
        %v1185 = vadd.f32 0.0, %v1184
        %v1186 = vpop.f32.mrb[0].mxu0
        %1187 = vmatprep.mubr.f32.mxu0 0.0
        %1188 = vmatmul.mubr.f32.gmra.mrb[0].mxu0 %v1116
        %v1189 = vpop.f32.mrb[0].mxu0
        %v1190 = vadd.f32 0.0, %v1189
        %v1191 = vpop.f32.mrb[0].mxu0
        %1192 = vdwg.mxu0
        %s1193 = scalar_lea.vmem [#allocation13], 32
        %v1194 = vld [vmem:[%s1193] sm:$0xff]
        %v1195 = vld [vmem:[%s1193 + $0x8] sm:$0xff]
        %v1196 = vadd.f32 %v1010, %v1024
        %v1197 = vadd.f32 %v1011, %v1025
        %v1199 = vsel %vm481, %v1194, 0
        %v1202 = vsel %vm481, %v1195, 0
        %1204 = vmatprep.subr.mxu0 0.0
        %1205 = vmatpush1.msra.mxu0 %v1196
        %1206 = vmatprep.subr.mxu0 0.0
        %1207 = vmatpush1.msra.mxu0 %v1197
        %1208 = vmatprep.subr.mxu0 0.0
        %1209 = vmatpush1.msra.mxu0 0.0
        %1210 = vmatprep.subr.mxu0 0.0
        %1211 = vmatpush1.msra.mxu0 0.0
        %1212 = vmatprep.subr.mxu0 0.0
        %1213 = vmatpush1.msra.mxu0 0.0
        %1214 = vmatprep.subr.mxu0 0.0
        %1215 = vmatpush1.msra.mxu0 0.0
        %1216 = vmatprep.subr.mxu0 0.0
        %1217 = vmatpush1.msra.mxu0 0.0
        %1218 = vmatprep.subr.mxu0 0.0
        %1219 = vmatpush1.msra.mxu0 0.0
        %1220 = vmatprep.subr.mxu0 0.0
        %1221 = vmatpush1.msra.mxu0 0.0
        %1222 = vmatprep.subr.mxu0 0.0
        %1223 = vmatpush1.msra.mxu0 0.0
        %1224 = vmatprep.subr.mxu0 0.0
        %1225 = vmatpush1.msra.mxu0 0.0
        %1226 = vmatprep.subr.mxu0 0.0
        %1227 = vmatpush1.msra.mxu0 0.0
        %1228 = vmatprep.subr.mxu0 0.0
        %1229 = vmatpush1.msra.mxu0 0.0
        %1230 = vmatprep.subr.mxu0 0.0
        %1231 = vmatpush1.msra.mxu0 0.0
        %1232 = vmatprep.subr.mxu0 0.0
        %1233 = vmatpush1.msra.mxu0 0.0
        %1234 = vmatprep.subr.mxu0 0.0
        %1235 = vmatpush1.msra.mxu0 0.0
        %1236 = vmatprep.subr.mxu0 0.0
        %1237 = vmatpush1.msra.mxu0 0.0
        %1238 = vmatprep.subr.mxu0 0.0
        %1239 = vmatpush1.msra.mxu0 0.0
        %1240 = vmatprep.subr.mxu0 0.0
        %1241 = vmatpush1.msra.mxu0 0.0
        %1242 = vmatprep.subr.mxu0 0.0
        %1243 = vmatpush1.msra.mxu0 0.0
        %1244 = vmatprep.subr.mxu0 0.0
        %1245 = vmatpush1.msra.mxu0 0.0
        %1246 = vmatprep.subr.mxu0 0.0
        %1247 = vmatpush1.msra.mxu0 0.0
        %1248 = vmatprep.subr.mxu0 0.0
        %1249 = vmatpush1.msra.mxu0 0.0
        %1250 = vmatprep.subr.mxu0 0.0
        %1251 = vmatpush1.msra.mxu0 0.0
        %1252 = vmatprep.subr.mxu0 0.0
        %1253 = vmatpush1.msra.mxu0 0.0
        %1254 = vmatprep.subr.mxu0 0.0
        %1255 = vmatpush1.msra.mxu0 0.0
        %1256 = vmatprep.subr.mxu0 0.0
        %1257 = vmatpush1.msra.mxu0 0.0
        %1258 = vmatprep.subr.mxu0 0.0
        %1259 = vmatpush1.msra.mxu0 0.0
        %1260 = vmatprep.subr.mxu0 0.0
        %1261 = vmatpush1.msra.mxu0 0.0
        %1262 = vmatprep.subr.mxu0 0.0
        %1263 = vmatpush1.msra.mxu0 0.0
        %1264 = vmatprep.subr.mxu0 0.0
        %1265 = vmatpush1.msra.mxu0 0.0
        %1266 = vmatprep.subr.mxu0 0.0
        %1267 = vmatpush1.msra.mxu0 0.0
        %1268 = vmatprep.mubr.f32.mxu0 0.0
        %1269 = vmatmul.mubr.f32.gmra.mrb[0].mxu0 %v1199
        %v1270 = vpop.f32.mrb[0].mxu0
        %v1271 = vadd.f32 0.0, %v1270
        %v1272 = vpop.f32.mrb[0].mxu0
        %1273 = vmatprep.mubr.f32.mxu0 0.0
        %1274 = vmatmul.mubr.f32.gmra.mrb[0].mxu0 %v1202
        %v1275 = vpop.f32.mrb[0].mxu0
        %v1276 = vadd.f32 0.0, %v1275
        %v1277 = vpop.f32.mrb[0].mxu0
        %1278 = vdwg.mxu0
        %v1279 = vsub.f32 %v1101, %v1185
        %v1280 = vsub.f32 %v1106, %v1190
        %v1281 = vsub.f32 %v1271, %v1101
        %v1282 = vsub.f32 %v1276, %v1106
        %v1283 = vsub.f32 %v1281, %v1185
        %v1284 = vsub.f32 %v1282, %v1190
        %v1285 = vld [vmem:[#allocation14] sm:$0xff]
        %v1286 = vld [vmem:[#allocation14 + $0x8] sm:$0xff]
        %v1287 = vld [vmem:[#allocation14 + $0x10] sm:$0xff]
        %v1288 = vld [vmem:[#allocation14 + $0x18] sm:$0xff]
        %v1289 = vld [vmem:[#allocation14 + $0x20] sm:$0xff]
        %v1290 = vld [vmem:[#allocation14 + $0x28] sm:$0xff]
        %v1291 = vld [vmem:[#allocation14 + $0x30] sm:$0xff]
        %v1292 = vld [vmem:[#allocation14 + $0x38] sm:$0xff]
        %s1293 = scalar_lea.vmem [#allocation14], 64
        %v1294 = vld [vmem:[%s1293] sm:$0xff]
        %v1295 = vld [vmem:[%s1293 + $0x8] sm:$0xff]
        %v1296 = vld [vmem:[%s1293 + $0x10] sm:$0xff]
        %v1297 = vld [vmem:[%s1293 + $0x18] sm:$0xff]
        %v1298 = vld [vmem:[%s1293 + $0x20] sm:$0xff]
        %v1299 = vld [vmem:[%s1293 + $0x28] sm:$0xff]
        %v1300 = vld [vmem:[%s1293 + $0x30] sm:$0xff]
        %v1301 = vld [vmem:[%s1293 + $0x38] sm:$0xff]
        %vm1302 = vcmask 523264
        %v1304 = vsel %vm1302, %v1283, 0
        %v1307 = vsel %vm1302, %v1284, 0
        %1309 = vmatprep.subr.mxu0 0.0
        %1310 = vmatpush1.msra.mxu0 %v1294
        %1311 = vmatprep.subr.mxu0 0.0
        %1312 = vmatpush1.msra.mxu0 %v1295
        %1313 = vmatprep.subr.mxu0 0.0
        %1314 = vmatpush1.msra.mxu0 %v1296
        %1315 = vmatprep.subr.mxu0 0.0
        %1316 = vmatpush1.msra.mxu0 %v1297
        %1317 = vmatprep.subr.mxu0 0.0
        %1318 = vmatpush1.msra.mxu0 %v1298
        %1319 = vmatprep.subr.mxu0 0.0
        %1320 = vmatpush1.msra.mxu0 %v1299
        %1321 = vmatprep.subr.mxu0 0.0
        %1322 = vmatpush1.msra.mxu0 %v1300
        %1323 = vmatprep.subr.mxu0 0.0
        %1324 = vmatpush1.msra.mxu0 %v1301
        %1325 = vmatprep.subr.mxu0 0.0
        %1326 = vmatpush1.msra.mxu0 0.0
        %1327 = vmatprep.subr.mxu0 0.0
        %1328 = vmatpush1.msra.mxu0 0.0
        %1329 = vmatprep.subr.mxu0 0.0
        %1330 = vmatpush1.msra.mxu0 0.0
        %1331 = vmatprep.subr.mxu0 0.0
        %1332 = vmatpush1.msra.mxu0 0.0
        %1333 = vmatprep.subr.mxu0 0.0
        %1334 = vmatpush1.msra.mxu0 0.0
        %1335 = vmatprep.subr.mxu0 0.0
        %1336 = vmatpush1.msra.mxu0 0.0
        %1337 = vmatprep.subr.mxu0 0.0
        %1338 = vmatpush1.msra.mxu0 0.0
        %1339 = vmatprep.subr.mxu0 0.0
        %1340 = vmatpush1.msra.mxu0 0.0
        %1341 = vmatprep.subr.mxu0 0.0
        %1342 = vmatpush1.msra.mxu0 0.0
        %1343 = vmatprep.subr.mxu0 0.0
        %1344 = vmatpush1.msra.mxu0 0.0
        %1345 = vmatprep.subr.mxu0 0.0
        %1346 = vmatpush1.msra.mxu0 0.0
        %1347 = vmatprep.subr.mxu0 0.0
        %1348 = vmatpush1.msra.mxu0 0.0
        %1349 = vmatprep.subr.mxu0 0.0
        %1350 = vmatpush1.msra.mxu0 0.0
        %1351 = vmatprep.subr.mxu0 0.0
        %1352 = vmatpush1.msra.mxu0 0.0
        %1353 = vmatprep.subr.mxu0 0.0
        %1354 = vmatpush1.msra.mxu0 0.0
        %1355 = vmatprep.subr.mxu0 0.0
        %1356 = vmatpush1.msra.mxu0 0.0
        %1357 = vmatprep.subr.mxu0 0.0
        %1358 = vmatpush1.msra.mxu0 0.0
        %1359 = vmatprep.subr.mxu0 0.0
        %1360 = vmatpush1.msra.mxu0 0.0
        %1361 = vmatprep.subr.mxu0 0.0
        %1362 = vmatpush1.msra.mxu0 0.0
        %1363 = vmatprep.subr.mxu0 0.0
        %1364 = vmatpush1.msra.mxu0 0.0
        %1365 = vmatprep.subr.mxu0 0.0
        %1366 = vmatpush1.msra.mxu0 0.0
        %1367 = vmatprep.subr.mxu0 0.0
        %1368 = vmatpush1.msra.mxu0 0.0
        %1369 = vmatprep.subr.mxu0 0.0
        %1370 = vmatpush1.msra.mxu0 0.0
        %1371 = vmatprep.subr.mxu0 0.0
        %1372 = vmatpush1.msra.mxu0 0.0
        %1373 = vmatprep.mubr.f32.mxu0 0.0
        %1374 = vmatmul.mubr.f32.gmra.mrb[0].mxu0 %v1304
        %v1375 = vpop.f32.mrb[0].mxu0
        %v1376 = vadd.f32 0.0, %v1375
        %v1377 = vpop.f32.mrb[0].mxu0
        %1378 = vmatprep.mubr.f32.mxu0 0.0
        %1379 = vmatmul.mubr.f32.gmra.mrb[0].mxu0 %v1307
        %v1380 = vpop.f32.mrb[0].mxu0
        %v1381 = vadd.f32 0.0, %v1380
        %v1382 = vpop.f32.mrb[0].mxu0
        %1383 = vdwg.mxu0
        %v1385 = vsel %vm1302, %v1279, 0
        %v1388 = vsel %vm1302, %v1280, 0
        %1390 = vmatprep.subr.mxu0 0.0
        %1391 = vmatpush1.msra.mxu0 %v1285
        %1392 = vmatprep.subr.mxu0 0.0
        %1393 = vmatpush1.msra.mxu0 %v1286
        %1394 = vmatprep.subr.mxu0 0.0
        %1395 = vmatpush1.msra.mxu0 %v1287
        %1396 = vmatprep.subr.mxu0 0.0
        %1397 = vmatpush1.msra.mxu0 %v1288
        %1398 = vmatprep.subr.mxu0 0.0
        %1399 = vmatpush1.msra.mxu0 %v1289
        %1400 = vmatprep.subr.mxu0 0.0
        %1401 = vmatpush1.msra.mxu0 %v1290
        %1402 = vmatprep.subr.mxu0 0.0
        %1403 = vmatpush1.msra.mxu0 %v1291
        %1404 = vmatprep.subr.mxu0 0.0
        %1405 = vmatpush1.msra.mxu0 %v1292
        %1406 = vmatprep.subr.mxu0 0.0
        %1407 = vmatpush1.msra.mxu0 0.0
        %1408 = vmatprep.subr.mxu0 0.0
        %1409 = vmatpush1.msra.mxu0 0.0
        %1410 = vmatprep.subr.mxu0 0.0
        %1411 = vmatpush1.msra.mxu0 0.0
        %1412 = vmatprep.subr.mxu0 0.0
        %1413 = vmatpush1.msra.mxu0 0.0
        %1414 = vmatprep.subr.mxu0 0.0
        %1415 = vmatpush1.msra.mxu0 0.0
        %1416 = vmatprep.subr.mxu0 0.0
        %1417 = vmatpush1.msra.mxu0 0.0
        %1418 = vmatprep.subr.mxu0 0.0
        %1419 = vmatpush1.msra.mxu0 0.0
        %1420 = vmatprep.subr.mxu0 0.0
        %1421 = vmatpush1.msra.mxu0 0.0
        %1422 = vmatprep.subr.mxu0 0.0
        %1423 = vmatpush1.msra.mxu0 0.0
        %1424 = vmatprep.subr.mxu0 0.0
        %1425 = vmatpush1.msra.mxu0 0.0
        %1426 = vmatprep.subr.mxu0 0.0
        %1427 = vmatpush1.msra.mxu0 0.0
        %1428 = vmatprep.subr.mxu0 0.0
        %1429 = vmatpush1.msra.mxu0 0.0
        %1430 = vmatprep.subr.mxu0 0.0
        %1431 = vmatpush1.msra.mxu0 0.0
        %1432 = vmatprep.subr.mxu0 0.0
        %1433 = vmatpush1.msra.mxu0 0.0
        %1434 = vmatprep.subr.mxu0 0.0
        %1435 = vmatpush1.msra.mxu0 0.0
        %1436 = vmatprep.subr.mxu0 0.0
        %1437 = vmatpush1.msra.mxu0 0.0
        %1438 = vmatprep.subr.mxu0 0.0
        %1439 = vmatpush1.msra.mxu0 0.0
        %1440 = vmatprep.subr.mxu0 0.0
        %1441 = vmatpush1.msra.mxu0 0.0
        %1442 = vmatprep.subr.mxu0 0.0
        %1443 = vmatpush1.msra.mxu0 0.0
        %1444 = vmatprep.subr.mxu0 0.0
        %1445 = vmatpush1.msra.mxu0 0.0
        %1446 = vmatprep.subr.mxu0 0.0
        %1447 = vmatpush1.msra.mxu0 0.0
        %1448 = vmatprep.subr.mxu0 0.0
        %1449 = vmatpush1.msra.mxu0 0.0
        %1450 = vmatprep.subr.mxu0 0.0
        %1451 = vmatpush1.msra.mxu0 0.0
        %1452 = vmatprep.subr.mxu0 0.0
        %1453 = vmatpush1.msra.mxu0 0.0
        %1454 = vmatprep.mubr.f32.mxu0 0.0
        %1455 = vmatmul.mubr.f32.gmra.mrb[0].mxu0 %v1385
        %v1456 = vpop.f32.mrb[0].mxu0
        %v1457 = vadd.f32 %v1376, %v1456
        %v1458 = vpop.f32.mrb[0].mxu0
        %1459 = vmatprep.mubr.f32.mxu0 0.0
        %1460 = vmatmul.mubr.f32.gmra.mrb[0].mxu0 %v1388
        %v1461 = vpop.f32.mrb[0].mxu0
        %v1462 = vadd.f32 %v1381, %v1461
        %v1463 = vpop.f32.mrb[0].mxu0
        %1464 = vdwg.mxu0
        %1465 = vst [vmem:[%s473] sm:$0xff] %v1457
        %1466 = vst [vmem:[%s473 + $0x8] sm:$0xff] %v1462
        %s1467 = sand.u32 %s222, 1
        %s1468 = scalar_lea.sflag [#allocation4], %s1467
        %s1469 = sand.u32 %s222, 1
        %s1470 = smul.addr %s1469, 16
        %s1471 = scalar_lea.vmem [#allocation16], %s1470
        // Predicated region
        $region85: #{tpu_custom_call.1} parent=51 // pred_check
          %p1472 = pneg %p232
        $region86: #{tpu_custom_call.1} parent=51 // pred_check_branch
          %1474 = sbr.rel (%p1472) target = $region88
        $region87: #{tpu_custom_call.1} parent=51 // pred_region
          %s1476 = ssub.s32 256, 256
          %1477 = vsyncadd %s1468, %s1476
          %s1478 = smul.addr %s31, 2
          %s1479 = smul.addr %s1478, 128
          %s1480 = scalar_lea.hbm %s8, %s1479
          %s1481 = sshll.u32 %s1471, 4
          %s1482 = int_to_ptr.vmem [resolvable:$true] %s1481
          %1487 = dma.vmem_to_hbm [thread:$0]  %s1482, 256, %s1480, %s1468, 128, 128, 8
        $region88: #{tpu_custom_call.1} parent=51 // pred_fallthru
          _
      $region52: #{tpu_custom_call.1} parent=5 // pred_fallthru
        _
      %p1488 = scmp.le.s32.totalorder 2, %s26
      // Predicated region
      $region89: #{tpu_custom_call.1} parent=5 // pred_check
        %p1489 = pneg %p1488
      $region90: #{tpu_custom_call.1} parent=5 // pred_check_branch
        %1491 = sbr.rel (%p1489) target = $region92
      $region91: #{tpu_custom_call.1} parent=5 // pred_region
        %s1492 = ssub.s32 %s26, 2
        // Predicated region
        $region93: #{tpu_custom_call.1} parent=91 // pred_check
          %p1493 = pneg %p238
        $region94: #{tpu_custom_call.1} parent=91 // pred_check_branch
          %1495 = sbr.rel (%p1493) target = $region96
        $region95: #{tpu_custom_call.1} parent=91 // pred_region
          %s1496 = sand.u32 %s223, 1
          %s1497 = scalar_lea.sflag [#allocation4], %s1496
          %s1498 = sand.u32 %s223, 1
          %s1499 = smul.addr %s1498, 16
          %s1500 = scalar_lea.vmem [#allocation16], %s1499
          %1501 = dma.done %s1497, 256
        $region96: #{tpu_custom_call.1} parent=91 // pred_fallthru
          _
      $region92: #{tpu_custom_call.1} parent=5 // pred_fallthru
        _
    $region6: #{tpu_custom_call.1} parent=1 // loop_footer
      %s30 = sadd.s32 1, %s26
    $region7: #{tpu_custom_call.1} parent=1 // loop_footer_branch
      %25 = sbr.rel target = $region3
    $region8: #{tpu_custom_call.1} parent=1 // loop_exit
      _
    %1502 = vsyncpa [#allocation3], 1
    %s1503 = scalar_lea.sflag [#allocation3], 1
    %1504 = vsyncpa %s1503, 1
    %1505 = vsyncpa [#allocation6], 1
    %s1506 = scalar_lea.sflag [#allocation6], 1
    %1507 = vsyncpa %s1506, 1
    %1508 = vsyncpa [#allocation9], 1
    %1509 = vsyncpa [#allocation12], 1
    %1510 = vsyncpa [#allocation15], 1
    %1511 = vsyncpa [#allocation4], 1
    %s1512 = scalar_lea.sflag [#allocation4], 1
    %1513 = vsyncpa %s1512, 1

</llo_original>
